<compile_context>
chip_gen: v7x
topology: tpu7x:2x2x1
jax: 0.10.0
libtpu: 0.0.40
codegen_flags: <defaults>
</compile_context>

<pallas_src>
import functools
import itertools
import math

import numpy as np
import jax
import jax.numpy as jnp
from jax.experimental import pallas as pl
from jax.experimental.pallas import tpu as pltpu


_MAX_ROW_TILE = 512       # rows per grid step: <=512 -> <=2.25 MB per out block


def _fdivmod(x_f, d):
    """floor-div / mod of a float32 array holding (possibly negative) integer
    values by a static positive python int `d`, via reciprocal multiply +
    one compare-and-correct step.  Exact for |x| < 2**23."""
    d_f = np.float32(d)
    q = jnp.floor(x_f * np.float32(1.0 / d))
    r = x_f - q * d_f
    q = jnp.where(r >= d_f, q + 1.0, q)      # fix rounding at exact multiples
    q = jnp.where(r < 0.0, q - 1.0, q)
    r = x_f - q * d_f
    return q, r


def _anchors_kernel(rows_ref, pir_ref, o_ref, *, tiles, tail_levels, ppr, lane_w):
    """Write anchor boxes for every pyramid level into one packed slab.

    rows_ref: (num_levels*4, LANE_W) f32 constant rows per level:
              [y_mask*stride, x_mask*stride, off + stride/2,
               pos_in_row*x_mask*stride + off + stride/2]
    pir_ref:  (1, LANE_W) f32, lane -> position index within a packed row.
    o_ref:    (TR, LANE_W) f32 block for this grid step; flattened element
              order is position-major, then anchor, then (y1, x1, y2, x2).
    """
    pid = pl.program_id(0)
    pir = pir_ref[...]                                     # (1, LANE_W) f32

    def lrow(l, k):                                        # (1, LANE_W) f32
        return rows_ref[4 * l + k:4 * l + k + 1, :]

    def emit_main_seg(seg):
        l, fw = seg["level"], seg["fw"]
        lr0, n, rl0 = seg["lr0"], seg["rows"], seg["rl0"]
        r_i = jax.lax.broadcasted_iota(jnp.int32, (n, 1), 0) + rl0
        if fw % ppr == 0:
            # All ppr positions of a packed row share one image row:
            #   i = r // (fw // ppr), j = (r % (fw // ppr)) * ppr + pos_in_row
            q = fw // ppr
            if q == 1:
                slab = r_i.astype(jnp.float32) * lrow(l, 0) + lrow(l, 3)
            else:
                if (q & (q - 1)) == 0:                     # column-only, tiny
                    sh = q.bit_length() - 1
                    i_c = jnp.right_shift(r_i, sh).astype(jnp.float32)
                    s_c = jnp.bitwise_and(r_i, q - 1).astype(jnp.float32)
                else:
                    i_c, s_c = _fdivmod(r_i.astype(jnp.float32), q)
                slab = (i_c * lrow(l, 0)
                        + (s_c * np.float32(ppr)) * lrow(l, 1)
                        + lrow(l, 3))
        else:
            # Row-aligned but fw not a multiple of ppr: per-element f32 divmod.
            p = r_i.astype(jnp.float32) * np.float32(ppr) + pir
            i_e, j_e = _fdivmod(p, fw)
            slab = i_e * lrow(l, 0) + j_e * lrow(l, 1) + lrow(l, 2)
        o_ref[lr0:lr0 + n, :] = slab

    def emit_tail_seg(seg):
        lr0, n, g_row0 = seg["lr0"], seg["rows"], seg["g_row0"]
        r_f = jax.lax.broadcasted_iota(jnp.int32, (n, 1), 0).astype(jnp.float32)
        g = (r_f + np.float32(g_row0)) * np.float32(ppr) + pir   # global pos
        acc = jnp.zeros((n, lane_w), jnp.float32)
        for lv in tail_levels:
            p = g - np.float32(lv["pos_start"])
            i_e, j_e = _fdivmod(p, lv["fw"])
            val = (i_e * lrow(lv["idx"], 0) + j_e * lrow(lv["idx"], 1)
                   + lrow(lv["idx"], 2))
            inside = (p >= 0.0) & (p < np.float32(lv["n"]))
            acc = acc + jnp.where(inside, val, 0.0)
        o_ref[lr0:lr0 + n, :] = acc

    def emit_tile(tile):
        for seg in tile["main"]:
            emit_main_seg(seg)
        if tile["tail"] is not None:
            emit_tail_seg(tile["tail"])

    if len(tiles) == 1:
        emit_tile(tiles[0])
    else:
        for t, tile in enumerate(tiles):
            pl.when(pid == t)(functools.partial(emit_tile, tile))


def _level_const_rows(stride, scales, ratios, anchor_scale, lane_w, ppr):
    """Per-level constant lane rows, precomputed in float64 on the host."""
    a4 = lane_w // ppr                                     # 4 * num_anchors
    pat_y = np.zeros(a4, np.float64)
    pat_x = np.zeros(a4, np.float64)
    pat_b = np.zeros(a4, np.float64)
    half = stride / 2.0
    for a, (scale, ratio) in enumerate(itertools.product(scales, ratios)):
        base = anchor_scale * stride * scale
        ax2 = base * ratio[0] / 2.0
        ay2 = base * ratio[1] / 2.0
        pat_y[4 * a + 0] = stride
        pat_b[4 * a + 0] = half - ay2                      # y1
        pat_x[4 * a + 1] = stride
        pat_b[4 * a + 1] = half - ax2                      # x1
        pat_y[4 * a + 2] = stride
        pat_b[4 * a + 2] = half + ay2                      # y2
        pat_x[4 * a + 3] = stride
        pat_b[4 * a + 3] = half + ax2                      # x2
    row_y = np.tile(pat_y, ppr)
    row_x = np.tile(pat_x, ppr)
    row_b = np.tile(pat_b, ppr)
    pir = np.repeat(np.arange(ppr, dtype=np.float64), a4)
    row_b3 = pir * row_x + row_b
    return np.stack([row_y, row_x, row_b, row_b3], axis=0)


@functools.lru_cache(maxsize=None)
def _anchors_for_shape(h, w, anchor_scale, strides, scales, ratios):
    num_anchors = len(scales) * len(ratios)
    a4 = 4 * num_anchors
    lane_w = a4 * 128 // math.gcd(a4, 128)                 # lane-dense width
    ppr = lane_w // a4                                     # positions per row

    levels, rows_np = [], []
    pos = 0
    tail_start = len(strides)
    for idx, stride in enumerate(strides):
        if h % stride != 0 or w % stride != 0:
            raise ValueError('input size must be divided by the stride.')
        fh, fw = h // stride, w // stride
        n = fh * fw
        if tail_start == len(strides):                     # still on main path
            n_rows, row_start = n // ppr, pos // ppr
            main_ok = (n % ppr == 0 and pos % ppr == 0
                       and row_start % 8 == 0 and n_rows >= 8)
            if not main_ok:
                tail_start = idx                           # this & later -> tail
        levels.append(dict(idx=idx, fw=fw, n=n, pos_start=pos,
                           row_start=pos // ppr, n_rows=n // ppr))
        rows_np.append(_level_const_rows(stride, scales, ratios, anchor_scale,
                                         lane_w, ppr))
        pos += n
    total_pos = pos
    assert total_pos < (1 << 23), "image too large for the f32 index path"
    r_total = -(-total_pos // ppr)                         # ceil

    main_levels = levels[:tail_start]
    tail_levels = tuple(dict(idx=lv["idx"], fw=lv["fw"], n=lv["n"],
                             pos_start=lv["pos_start"])
                        for lv in levels[tail_start:])
    tail_pos0 = (levels[tail_start]["pos_start"] if tail_start < len(levels)
                 else total_pos)
    tail_row0 = tail_pos0 // ppr           # exact: main levels fill whole rows

    # Row-tile size: split into <=512-row tiles, rounded to a multiple of 8,
    # balanced so padding and per-step overhead stay tiny.
    num_tiles = max(1, -(-r_total // _MAX_ROW_TILE))
    tr = -(-r_total // num_tiles)
    tr = -(-tr // 8) * 8
    r_padded = num_tiles * tr

    tiles = []
    for t in range(num_tiles):
        g0, g1 = t * tr, (t + 1) * tr
        main_segs = []
        for lv in main_levels:
            ls, le = lv["row_start"], lv["row_start"] + lv["n_rows"]
            s, e = max(ls, g0), min(le, g1)
            if s < e:
                main_segs.append(dict(level=lv["idx"], fw=lv["fw"],
                                      lr0=s - g0, rows=e - s, rl0=s - ls))
        tail_seg = None
        if tail_levels and g1 > tail_row0:
            s = max(tail_row0, g0)
            tail_seg = dict(lr0=s - g0, rows=g1 - s, g_row0=s)
        tiles.append(dict(main=tuple(main_segs), tail=tail_seg))
    tiles = tuple(tiles)

    rows_arr = jnp.asarray(np.concatenate(rows_np, axis=0), dtype=jnp.float32)
    pir_arr = jnp.asarray(
        np.repeat(np.arange(ppr, dtype=np.float32), a4)[None, :])

    kern = functools.partial(
        _anchors_kernel, tiles=tiles, tail_levels=tail_levels,
        ppr=ppr, lane_w=lane_w)

    out = pl.pallas_call(
        kern,
        grid=(num_tiles,),
        in_specs=[
            pl.BlockSpec((4 * len(strides), lane_w), lambda i: (0, 0)),
            pl.BlockSpec((1, lane_w), lambda i: (0, 0)),
        ],
        out_specs=pl.BlockSpec((tr, lane_w), lambda i: (i, 0)),
        out_shape=jax.ShapeDtypeStruct((r_padded, lane_w), jnp.float32),
        compiler_params=pltpu.CompilerParams(
            dimension_semantics=("parallel",)),
    )(rows_arr, pir_arr)

    # Strip the end padding; row-major element order already matches the
    # reference (position, anchor, (y1,x1,y2,x2)), so this is just a reshape.
    boxes = out.reshape(-1)[: total_pos * a4].reshape(total_pos * num_anchors, 4)
    return boxes[None]                                     # (1, N, 4)


def generate_anchors(image, anchor_scale=4.0, pyramid_levels=(3, 4, 5, 6, 7),
                     strides=None, scales=None, ratios=None):
    """JAX/Pallas equivalent of Anchors.forward (float32), cached per shape."""
    h, w = int(image.shape[2]), int(image.shape[3])
    if strides is None:
        strides = tuple(2 ** x for x in pyramid_levels)
    if scales is None:
        scales = (2 ** 0, 2 ** (1.0 / 3.0), 2 ** (2.0 / 3.0))
    if ratios is None:
        ratios = ((1.0, 1.0), (1.4, 0.7), (0.7, 1.4))
    return _anchors_for_shape(h, w, float(anchor_scale),
                              tuple(int(s) for s in strides),
                              tuple(float(s) for s in scales),
                              tuple((float(a), float(b)) for a, b in ratios))


def _reference_anchors_numpy(image_shape, anchor_scale, strides, scales, ratios):
    """Direct numpy port of the PyTorch module, for verification."""
    boxes_all = []
    for stride in strides:
        boxes_level = []
        for scale, ratio in itertools.product(scales, ratios):
            base_anchor_size = anchor_scale * stride * scale
            anchor_size_x_2 = base_anchor_size * ratio[0] / 2.0
            anchor_size_y_2 = base_anchor_size * ratio[1] / 2.0
            x = np.arange(stride / 2, image_shape[1], stride)
            y = np.arange(stride / 2, image_shape[0], stride)
            xv, yv = np.meshgrid(x, y)
            xv = xv.reshape(-1)
            yv = yv.reshape(-1)
            boxes = np.vstack((yv - anchor_size_y_2, xv - anchor_size_x_2,
                               yv + anchor_size_y_2, xv + anchor_size_x_2))
            boxes = np.swapaxes(boxes, 0, 1)
            boxes_level.append(np.expand_dims(boxes, axis=1))
        boxes_level = np.concatenate(boxes_level, axis=1)
        boxes_all.append(boxes_level.reshape([-1, 4]))
    return np.vstack(boxes_all).astype(np.float32)[None]


if __name__ == "__main__":
    key = jax.random.PRNGKey(0)
    k1, k2 = jax.random.split(key)
    strides = tuple(2 ** x for x in (3, 4, 5, 6, 7))
    scales = (2 ** 0, 2 ** (1.0 / 3.0), 2 ** (2.0 / 3.0))
    ratios = ((1.0, 1.0), (1.4, 0.7), (0.7, 1.4))

    def check(hw, anchors):
        ref = _reference_anchors_numpy(hw, 4.0, strides, scales, ratios)
        assert anchors.shape == ref.shape, (anchors.shape, ref.shape)
        assert anchors.dtype == jnp.float32
        np.testing.assert_allclose(np.asarray(anchors), ref,
                                   rtol=1e-5, atol=1e-3)

    # Smallest valid image: H, W must be multiples of 2**max(pyramid_level)=128.
    image = jax.random.normal(k1, (2, 3, 128, 128), dtype=jnp.float32)  # NCHW
    anchors = jax.block_until_ready(generate_anchors(image))
    check((128, 128), anchors)

    # Exercises the fully-aligned broadcast fast path.
    image2 = jax.random.normal(k2, (1, 3, 256, 256), dtype=jnp.float32)
    check((256, 256), jax.block_until_ready(generate_anchors(image2)))

    # Non-power-of-two feature widths (80, 40, 20, 10, 5): exercises the f32
    # reciprocal divmod per-element path and the multi-level masked tail.
    image3 = jnp.zeros((1, 3, 640, 640), jnp.float32)
    check((640, 640), jax.block_until_ready(generate_anchors(image3)))

    # Large enough for more than one row tile: exercises the tiled grid path.
    image4 = jnp.zeros((1, 3, 1024, 1024), jnp.float32)
    check((1024, 1024), jax.block_until_ready(generate_anchors(image4)))

    # Memoised per image shape, like the PyTorch module's last_anchors cache.
    assert generate_anchors(image) is anchors

    print("KERNEL_OK")
</pallas_src>

<mosaic_0001>
module attributes {stable_mosaic.version = 11 : i64} {
  func.func @_anchors_kernel(%arg0: i32, %arg1: memref<20x1152xf32, #tpu.memory_space<vmem>>, %arg2: memref<1x1152xf32, #tpu.memory_space<vmem>>, %arg3: memref<16x1152xf32, #tpu.memory_space<vmem>>) attributes {dimension_semantics = [#tpu.dimension_semantics<parallel>], iteration_bounds = array<i64: 1>, scalar_prefetch = 0 : i64, scratch_operands = 0 : i64, tpu.core_type = #tpu.core_type<tc>, window_params = [{pipeline_mode = #tpu.pipeline_mode<synchronous>, transform_indices = @transform_0, window_bounds = array<i64: 20, 1152>}, {pipeline_mode = #tpu.pipeline_mode<synchronous>, transform_indices = @transform_1, window_bounds = array<i64: 1, 1152>}, {transform_indices = @transform_2, window_bounds = array<i64: 16, 1152>}]} {
    %c0 = arith.constant 0 : index
    %c0_0 = arith.constant 0 : index
    %0 = vector.load %arg2[%c0, %c0_0] : memref<1x1152xf32, #tpu.memory_space<vmem>>, vector<1x1152xf32>
    %1 = tpu.iota {dimensions = array<i32: 0>} : vector<8x1xi32>
    %c0_i32 = arith.constant 0 : i32
    %2 = vector.broadcast %c0_i32 : i32 to vector<8x1xi32>
    %3 = arith.addi %1, %2 : vector<8x1xi32>
    %4 = arith.sitofp %3 : vector<8x1xi32> to vector<8x1xf32>
    %cst = arith.constant 3.200000e+01 : f32
    %5 = vector.broadcast %cst : f32 to vector<8x1xf32>
    %6 = arith.mulf %4, %5 : vector<8x1xf32>
    %7 = vector.broadcast %6 : vector<8x1xf32> to vector<8x1152xf32>
    %8 = vector.broadcast %0 : vector<1x1152xf32> to vector<8x1152xf32>
    %9 = arith.addf %7, %8 : vector<8x1152xf32>
    %cst_1 = arith.constant 6.250000e-02 : f32
    %10 = vector.broadcast %cst_1 : f32 to vector<8x1152xf32>
    %11 = arith.mulf %9, %10 : vector<8x1152xf32>
    %12 = math.floor %11 : vector<8x1152xf32>
    %cst_2 = arith.constant 1.600000e+01 : f32
    %13 = vector.broadcast %cst_2 : f32 to vector<8x1152xf32>
    %14 = arith.mulf %12, %13 : vector<8x1152xf32>
    %15 = arith.subf %9, %14 : vector<8x1152xf32>
    %cst_3 = arith.constant 1.600000e+01 : f32
    %16 = vector.broadcast %cst_3 : f32 to vector<8x1152xf32>
    %17 = arith.cmpf oge, %15, %16 : vector<8x1152xf32>
    %cst_4 = arith.constant 1.000000e+00 : f32
    %18 = vector.broadcast %cst_4 : f32 to vector<8x1152xf32>
    %19 = arith.addf %12, %18 : vector<8x1152xf32>
    %20 = arith.select %17, %19, %12 : vector<8x1152xi1>, vector<8x1152xf32>
    %cst_5 = arith.constant 0.000000e+00 : f32
    %21 = vector.broadcast %cst_5 : f32 to vector<8x1152xf32>
    %22 = arith.cmpf olt, %15, %21 : vector<8x1152xf32>
    %cst_6 = arith.constant 1.000000e+00 : f32
    %23 = vector.broadcast %cst_6 : f32 to vector<8x1152xf32>
    %24 = arith.subf %20, %23 : vector<8x1152xf32>
    %25 = arith.select %22, %24, %20 : vector<8x1152xi1>, vector<8x1152xf32>
    %cst_7 = arith.constant 1.600000e+01 : f32
    %26 = vector.broadcast %cst_7 : f32 to vector<8x1152xf32>
    %27 = arith.mulf %25, %26 : vector<8x1152xf32>
    %28 = arith.subf %9, %27 : vector<8x1152xf32>
    %c0_8 = arith.constant 0 : index
    %c0_9 = arith.constant 0 : index
    %29 = vector.load %arg1[%c0_8, %c0_9] : memref<20x1152xf32, #tpu.memory_space<vmem>>, vector<1x1152xf32>
    %30 = vector.broadcast %29 : vector<1x1152xf32> to vector<8x1152xf32>
    %31 = arith.mulf %25, %30 : vector<8x1152xf32>
    %c1 = arith.constant 1 : index
    %c0_10 = arith.constant 0 : index
    %32 = vector.load %arg1[%c1, %c0_10] : memref<20x1152xf32, #tpu.memory_space<vmem>>, vector<1x1152xf32>
    %33 = vector.broadcast %32 : vector<1x1152xf32> to vector<8x1152xf32>
    %34 = arith.mulf %28, %33 : vector<8x1152xf32>
    %35 = arith.addf %31, %34 : vector<8x1152xf32>
    %c2 = arith.constant 2 : index
    %c0_11 = arith.constant 0 : index
    %36 = vector.load %arg1[%c2, %c0_11] : memref<20x1152xf32, #tpu.memory_space<vmem>>, vector<1x1152xf32>
    %37 = vector.broadcast %36 : vector<1x1152xf32> to vector<8x1152xf32>
    %38 = arith.addf %35, %37 : vector<8x1152xf32>
    %c0_12 = arith.constant 0 : index
    %c0_13 = arith.constant 0 : index
    %39 = vector.load %arg3[%c0_12, %c0_13] : memref<16x1152xf32, #tpu.memory_space<vmem>>, vector<8x1152xf32>
    tpu.vector_store %arg3[%c0_12, %c0_13], %38 {strides = array<i32>} : memref<16x1152xf32, #tpu.memory_space<vmem>>, vector<8x1152xf32>,
    %40 = tpu.iota {dimensions = array<i32: 0>} : vector<8x1xi32>
    %41 = arith.sitofp %40 : vector<8x1xi32> to vector<8x1xf32>
    %cst_14 = arith.constant 8.000000e+00 : f32
    %42 = vector.broadcast %cst_14 : f32 to vector<8x1xf32>
    %43 = arith.addf %41, %42 : vector<8x1xf32>
    %cst_15 = arith.constant 3.200000e+01 : f32
    %44 = vector.broadcast %cst_15 : f32 to vector<8x1xf32>
    %45 = arith.mulf %43, %44 : vector<8x1xf32>
    %46 = vector.broadcast %45 : vector<8x1xf32> to vector<8x1152xf32>
    %47 = vector.broadcast %0 : vector<1x1152xf32> to vector<8x1152xf32>
    %48 = arith.addf %46, %47 : vector<8x1152xf32>
    %cst_16 = arith.constant 0.000000e+00 : f32
    %49 = vector.broadcast %cst_16 : f32 to vector<8x1152xf32>
    %cst_17 = arith.constant 2.560000e+02 : f32
    %50 = vector.broadcast %cst_17 : f32 to vector<8x1152xf32>
    %51 = arith.subf %48, %50 : vector<8x1152xf32>
    %cst_18 = arith.constant 1.250000e-01 : f32
    %52 = vector.broadcast %cst_18 : f32 to vector<8x1152xf32>
    %53 = arith.mulf %51, %52 : vector<8x1152xf32>
    %54 = math.floor %53 : vector<8x1152xf32>
    %cst_19 = arith.constant 8.000000e+00 : f32
    %55 = vector.broadcast %cst_19 : f32 to vector<8x1152xf32>
    %56 = arith.mulf %54, %55 : vector<8x1152xf32>
    %57 = arith.subf %51, %56 : vector<8x1152xf32>
    %cst_20 = arith.constant 8.000000e+00 : f32
    %58 = vector.broadcast %cst_20 : f32 to vector<8x1152xf32>
    %59 = arith.cmpf oge, %57, %58 : vector<8x1152xf32>
    %cst_21 = arith.constant 1.000000e+00 : f32
    %60 = vector.broadcast %cst_21 : f32 to vector<8x1152xf32>
    %61 = arith.addf %54, %60 : vector<8x1152xf32>
    %62 = arith.select %59, %61, %54 : vector<8x1152xi1>, vector<8x1152xf32>
    %cst_22 = arith.constant 0.000000e+00 : f32
    %63 = vector.broadcast %cst_22 : f32 to vector<8x1152xf32>
    %64 = arith.cmpf olt, %57, %63 : vector<8x1152xf32>
    %cst_23 = arith.constant 1.000000e+00 : f32
    %65 = vector.broadcast %cst_23 : f32 to vector<8x1152xf32>
    %66 = arith.subf %62, %65 : vector<8x1152xf32>
    %67 = arith.select %64, %66, %62 : vector<8x1152xi1>, vector<8x1152xf32>
    %cst_24 = arith.constant 8.000000e+00 : f32
    %68 = vector.broadcast %cst_24 : f32 to vector<8x1152xf32>
    %69 = arith.mulf %67, %68 : vector<8x1152xf32>
    %70 = arith.subf %51, %69 : vector<8x1152xf32>
    %c4 = arith.constant 4 : index
    %c0_25 = arith.constant 0 : index
    %71 = vector.load %arg1[%c4, %c0_25] : memref<20x1152xf32, #tpu.memory_space<vmem>>, vector<1x1152xf32>
    %72 = vector.broadcast %71 : vector<1x1152xf32> to vector<8x1152xf32>
    %73 = arith.mulf %67, %72 : vector<8x1152xf32>
    %c5 = arith.constant 5 : index
    %c0_26 = arith.constant 0 : index
    %74 = vector.load %arg1[%c5, %c0_26] : memref<20x1152xf32, #tpu.memory_space<vmem>>, vector<1x1152xf32>
    %75 = vector.broadcast %74 : vector<1x1152xf32> to vector<8x1152xf32>
    %76 = arith.mulf %70, %75 : vector<8x1152xf32>
    %77 = arith.addf %73, %76 : vector<8x1152xf32>
    %c6 = arith.constant 6 : index
    %c0_27 = arith.constant 0 : index
    %78 = vector.load %arg1[%c6, %c0_27] : memref<20x1152xf32, #tpu.memory_space<vmem>>, vector<1x1152xf32>
    %79 = vector.broadcast %78 : vector<1x1152xf32> to vector<8x1152xf32>
    %80 = arith.addf %77, %79 : vector<8x1152xf32>
    %cst_28 = arith.constant 0.000000e+00 : f32
    %81 = vector.broadcast %cst_28 : f32 to vector<8x1152xf32>
    %82 = arith.cmpf oge, %51, %81 : vector<8x1152xf32>
    %cst_29 = arith.constant 6.400000e+01 : f32
    %83 = vector.broadcast %cst_29 : f32 to vector<8x1152xf32>
    %84 = arith.cmpf olt, %51, %83 : vector<8x1152xf32>
    %85 = arith.andi %82, %84 : vector<8x1152xi1>
    %cst_30 = arith.constant 0.000000e+00 : f32
    %86 = vector.broadcast %cst_30 : f32 to vector<8x1152xf32>
    %87 = arith.select %85, %80, %86 : vector<8x1152xi1>, vector<8x1152xf32>
    %88 = arith.addf %49, %87 : vector<8x1152xf32>
    %cst_31 = arith.constant 3.200000e+02 : f32
    %89 = vector.broadcast %cst_31 : f32 to vector<8x1152xf32>
    %90 = arith.subf %48, %89 : vector<8x1152xf32>
    %cst_32 = arith.constant 2.500000e-01 : f32
    %91 = vector.broadcast %cst_32 : f32 to vector<8x1152xf32>
    %92 = arith.mulf %90, %91 : vector<8x1152xf32>
    %93 = math.floor %92 : vector<8x1152xf32>
    %cst_33 = arith.constant 4.000000e+00 : f32
    %94 = vector.broadcast %cst_33 : f32 to vector<8x1152xf32>
    %95 = arith.mulf %93, %94 : vector<8x1152xf32>
    %96 = arith.subf %90, %95 : vector<8x1152xf32>
    %cst_34 = arith.constant 4.000000e+00 : f32
    %97 = vector.broadcast %cst_34 : f32 to vector<8x1152xf32>
    %98 = arith.cmpf oge, %96, %97 : vector<8x1152xf32>
    %cst_35 = arith.constant 1.000000e+00 : f32
    %99 = vector.broadcast %cst_35 : f32 to vector<8x1152xf32>
    %100 = arith.addf %93, %99 : vector<8x1152xf32>
    %101 = arith.select %98, %100, %93 : vector<8x1152xi1>, vector<8x1152xf32>
    %cst_36 = arith.constant 0.000000e+00 : f32
    %102 = vector.broadcast %cst_36 : f32 to vector<8x1152xf32>
    %103 = arith.cmpf olt, %96, %102 : vector<8x1152xf32>
    %cst_37 = arith.constant 1.000000e+00 : f32
    %104 = vector.broadcast %cst_37 : f32 to vector<8x1152xf32>
    %105 = arith.subf %101, %104 : vector<8x1152xf32>
    %106 = arith.select %103, %105, %101 : vector<8x1152xi1>, vector<8x1152xf32>
    %cst_38 = arith.constant 4.000000e+00 : f32
    %107 = vector.broadcast %cst_38 : f32 to vector<8x1152xf32>
    %108 = arith.mulf %106, %107 : vector<8x1152xf32>
    %109 = arith.subf %90, %108 : vector<8x1152xf32>
    %c8 = arith.constant 8 : index
    %c0_39 = arith.constant 0 : index
    %110 = vector.load %arg1[%c8, %c0_39] : memref<20x1152xf32, #tpu.memory_space<vmem>>, vector<1x1152xf32>
    %111 = vector.broadcast %110 : vector<1x1152xf32> to vector<8x1152xf32>
    %112 = arith.mulf %106, %111 : vector<8x1152xf32>
    %c9 = arith.constant 9 : index
    %c0_40 = arith.constant 0 : index
    %113 = vector.load %arg1[%c9, %c0_40] : memref<20x1152xf32, #tpu.memory_space<vmem>>, vector<1x1152xf32>
    %114 = vector.broadcast %113 : vector<1x1152xf32> to vector<8x1152xf32>
    %115 = arith.mulf %109, %114 : vector<8x1152xf32>
    %116 = arith.addf %112, %115 : vector<8x1152xf32>
    %c10 = arith.constant 10 : index
    %c0_41 = arith.constant 0 : index
    %117 = vector.load %arg1[%c10, %c0_41] : memref<20x1152xf32, #tpu.memory_space<vmem>>, vector<1x1152xf32>
    %118 = vector.broadcast %117 : vector<1x1152xf32> to vector<8x1152xf32>
    %119 = arith.addf %116, %118 : vector<8x1152xf32>
    %cst_42 = arith.constant 0.000000e+00 : f32
    %120 = vector.broadcast %cst_42 : f32 to vector<8x1152xf32>
    %121 = arith.cmpf oge, %90, %120 : vector<8x1152xf32>
    %cst_43 = arith.constant 1.600000e+01 : f32
    %122 = vector.broadcast %cst_43 : f32 to vector<8x1152xf32>
    %123 = arith.cmpf olt, %90, %122 : vector<8x1152xf32>
    %124 = arith.andi %121, %123 : vector<8x1152xi1>
    %cst_44 = arith.constant 0.000000e+00 : f32
    %125 = vector.broadcast %cst_44 : f32 to vector<8x1152xf32>
    %126 = arith.select %124, %119, %125 : vector<8x1152xi1>, vector<8x1152xf32>
    %127 = arith.addf %88, %126 : vector<8x1152xf32>
    %cst_45 = arith.constant 3.360000e+02 : f32
    %128 = vector.broadcast %cst_45 : f32 to vector<8x1152xf32>
    %129 = arith.subf %48, %128 : vector<8x1152xf32>
    %cst_46 = arith.constant 5.000000e-01 : f32
    %130 = vector.broadcast %cst_46 : f32 to vector<8x1152xf32>
    %131 = arith.mulf %129, %130 : vector<8x1152xf32>
    %132 = math.floor %131 : vector<8x1152xf32>
    %cst_47 = arith.constant 2.000000e+00 : f32
    %133 = vector.broadcast %cst_47 : f32 to vector<8x1152xf32>
    %134 = arith.mulf %132, %133 : vector<8x1152xf32>
    %135 = arith.subf %129, %134 : vector<8x1152xf32>
    %cst_48 = arith.constant 2.000000e+00 : f32
    %136 = vector.broadcast %cst_48 : f32 to vector<8x1152xf32>
    %137 = arith.cmpf oge, %135, %136 : vector<8x1152xf32>
    %cst_49 = arith.constant 1.000000e+00 : f32
    %138 = vector.broadcast %cst_49 : f32 to vector<8x1152xf32>
    %139 = arith.addf %132, %138 : vector<8x1152xf32>
    %140 = arith.select %137, %139, %132 : vector<8x1152xi1>, vector<8x1152xf32>
    %cst_50 = arith.constant 0.000000e+00 : f32
    %141 = vector.broadcast %cst_50 : f32 to vector<8x1152xf32>
    %142 = arith.cmpf olt, %135, %141 : vector<8x1152xf32>
    %cst_51 = arith.constant 1.000000e+00 : f32
    %143 = vector.broadcast %cst_51 : f32 to vector<8x1152xf32>
    %144 = arith.subf %140, %143 : vector<8x1152xf32>
    %145 = arith.select %142, %144, %140 : vector<8x1152xi1>, vector<8x1152xf32>
    %cst_52 = arith.constant 2.000000e+00 : f32
    %146 = vector.broadcast %cst_52 : f32 to vector<8x1152xf32>
    %147 = arith.mulf %145, %146 : vector<8x1152xf32>
    %148 = arith.subf %129, %147 : vector<8x1152xf32>
    %c12 = arith.constant 12 : index
    %c0_53 = arith.constant 0 : index
    %149 = vector.load %arg1[%c12, %c0_53] : memref<20x1152xf32, #tpu.memory_space<vmem>>, vector<1x1152xf32>
    %150 = vector.broadcast %149 : vector<1x1152xf32> to vector<8x1152xf32>
    %151 = arith.mulf %145, %150 : vector<8x1152xf32>
    %c13 = arith.constant 13 : index
    %c0_54 = arith.constant 0 : index
    %152 = vector.load %arg1[%c13, %c0_54] : memref<20x1152xf32, #tpu.memory_space<vmem>>, vector<1x1152xf32>
    %153 = vector.broadcast %152 : vector<1x1152xf32> to vector<8x1152xf32>
    %154 = arith.mulf %148, %153 : vector<8x1152xf32>
    %155 = arith.addf %151, %154 : vector<8x1152xf32>
    %c14 = arith.constant 14 : index
    %c0_55 = arith.constant 0 : index
    %156 = vector.load %arg1[%c14, %c0_55] : memref<20x1152xf32, #tpu.memory_space<vmem>>, vector<1x1152xf32>
    %157 = vector.broadcast %156 : vector<1x1152xf32> to vector<8x1152xf32>
    %158 = arith.addf %155, %157 : vector<8x1152xf32>
    %cst_56 = arith.constant 0.000000e+00 : f32
    %159 = vector.broadcast %cst_56 : f32 to vector<8x1152xf32>
    %160 = arith.cmpf oge, %129, %159 : vector<8x1152xf32>
    %cst_57 = arith.constant 4.000000e+00 : f32
    %161 = vector.broadcast %cst_57 : f32 to vector<8x1152xf32>
    %162 = arith.cmpf olt, %129, %161 : vector<8x1152xf32>
    %163 = arith.andi %160, %162 : vector<8x1152xi1>
    %cst_58 = arith.constant 0.000000e+00 : f32
    %164 = vector.broadcast %cst_58 : f32 to vector<8x1152xf32>
    %165 = arith.select %163, %158, %164 : vector<8x1152xi1>, vector<8x1152xf32>
    %166 = arith.addf %127, %165 : vector<8x1152xf32>
    %cst_59 = arith.constant 3.400000e+02 : f32
    %167 = vector.broadcast %cst_59 : f32 to vector<8x1152xf32>
    %168 = arith.subf %48, %167 : vector<8x1152xf32>
    %cst_60 = arith.constant 1.000000e+00 : f32
    %169 = vector.broadcast %cst_60 : f32 to vector<8x1152xf32>
    %170 = arith.mulf %168, %169 : vector<8x1152xf32>
    %171 = math.floor %170 : vector<8x1152xf32>
    %cst_61 = arith.constant 1.000000e+00 : f32
    %172 = vector.broadcast %cst_61 : f32 to vector<8x1152xf32>
    %173 = arith.mulf %171, %172 : vector<8x1152xf32>
    %174 = arith.subf %168, %173 : vector<8x1152xf32>
    %cst_62 = arith.constant 1.000000e+00 : f32
    %175 = vector.broadcast %cst_62 : f32 to vector<8x1152xf32>
    %176 = arith.cmpf oge, %174, %175 : vector<8x1152xf32>
    %cst_63 = arith.constant 1.000000e+00 : f32
    %177 = vector.broadcast %cst_63 : f32 to vector<8x1152xf32>
    %178 = arith.addf %171, %177 : vector<8x1152xf32>
    %179 = arith.select %176, %178, %171 : vector<8x1152xi1>, vector<8x1152xf32>
    %cst_64 = arith.constant 0.000000e+00 : f32
    %180 = vector.broadcast %cst_64 : f32 to vector<8x1152xf32>
    %181 = arith.cmpf olt, %174, %180 : vector<8x1152xf32>
    %cst_65 = arith.constant 1.000000e+00 : f32
    %182 = vector.broadcast %cst_65 : f32 to vector<8x1152xf32>
    %183 = arith.subf %179, %182 : vector<8x1152xf32>
    %184 = arith.select %181, %183, %179 : vector<8x1152xi1>, vector<8x1152xf32>
    %cst_66 = arith.constant 1.000000e+00 : f32
    %185 = vector.broadcast %cst_66 : f32 to vector<8x1152xf32>
    %186 = arith.mulf %184, %185 : vector<8x1152xf32>
    %187 = arith.subf %168, %186 : vector<8x1152xf32>
    %c16 = arith.constant 16 : index
    %c0_67 = arith.constant 0 : index
    %188 = vector.load %arg1[%c16, %c0_67] : memref<20x1152xf32, #tpu.memory_space<vmem>>, vector<1x1152xf32>
    %189 = vector.broadcast %188 : vector<1x1152xf32> to vector<8x1152xf32>
    %190 = arith.mulf %184, %189 : vector<8x1152xf32>
    %c17 = arith.constant 17 : index
    %c0_68 = arith.constant 0 : index
    %191 = vector.load %arg1[%c17, %c0_68] : memref<20x1152xf32, #tpu.memory_space<vmem>>, vector<1x1152xf32>
    %192 = vector.broadcast %191 : vector<1x1152xf32> to vector<8x1152xf32>
    %193 = arith.mulf %187, %192 : vector<8x1152xf32>
    %194 = arith.addf %190, %193 : vector<8x1152xf32>
    %c18 = arith.constant 18 : index
    %c0_69 = arith.constant 0 : index
    %195 = vector.load %arg1[%c18, %c0_69] : memref<20x1152xf32, #tpu.memory_space<vmem>>, vector<1x1152xf32>
    %196 = vector.broadcast %195 : vector<1x1152xf32> to vector<8x1152xf32>
    %197 = arith.addf %194, %196 : vector<8x1152xf32>
    %cst_70 = arith.constant 0.000000e+00 : f32
    %198 = vector.broadcast %cst_70 : f32 to vector<8x1152xf32>
    %199 = arith.cmpf oge, %168, %198 : vector<8x1152xf32>
    %cst_71 = arith.constant 1.000000e+00 : f32
    %200 = vector.broadcast %cst_71 : f32 to vector<8x1152xf32>
    %201 = arith.cmpf olt, %168, %200 : vector<8x1152xf32>
    %202 = arith.andi %199, %201 : vector<8x1152xi1>
    %cst_72 = arith.constant 0.000000e+00 : f32
    %203 = vector.broadcast %cst_72 : f32 to vector<8x1152xf32>
    %204 = arith.select %202, %197, %203 : vector<8x1152xi1>, vector<8x1152xf32>
    %205 = arith.addf %166, %204 : vector<8x1152xf32>
    %c8_73 = arith.constant 8 : index
    %c0_74 = arith.constant 0 : index
    %206 = vector.load %arg3[%c8_73, %c0_74] : memref<16x1152xf32, #tpu.memory_space<vmem>>, vector<8x1152xf32>
    tpu.vector_store %arg3[%c8_73, %c0_74], %205 {strides = array<i32>} : memref<16x1152xf32, #tpu.memory_space<vmem>>, vector<8x1152xf32>,
    return
  }
  func.func @transform_0(%arg0: i32) -> (i32, i32) {
    %c0_i32 = arith.constant 0 : i32
    %c0_i32_0 = arith.constant 0 : i32
    %c0_i32_1 = arith.constant 0 : i32
    return %c0_i32, %c0_i32_0 : i32, i32
  }
  func.func @transform_1(%arg0: i32) -> (i32, i32) {
    %c0_i32 = arith.constant 0 : i32
    %c0_i32_0 = arith.constant 0 : i32
    %c0_i32_1 = arith.constant 0 : i32
    return %c0_i32, %c0_i32_0 : i32, i32
  }
  func.func @transform_2(%arg0: i32) -> (i32, i32) {
    %c0_i32 = arith.constant 0 : i32
    %c0_i32_0 = arith.constant 0 : i32
    return %arg0, %c0_i32 : i32, i32
  }
}

</mosaic_0001>

<llo_original>
// kernel: tpu_custom_call.1
$region0: #{tpu_custom_call.1}
  #allocation0 [shape = 'u32[]', space=smem, size = 0x4, offset = 0x4, fixed_abs, tag = 'smem constant byte address 0x4 - core index']
  #allocation1 [shape = 'u32[144,128]{1,0:T(1,128)}', space=vmem, size = 0x12000, scoped, tag = 'internal scratch']
  %s0 = inlined_call_operand.hbm [shape: f32[20,1152], index: 0, kind: input, shape index: {}]
  %s1 = inlined_call_operand.hbm [shape: f32[1,1152], index: 1, kind: input, shape index: {}]
  %s2 = inlined_call_operand.hbm [shape: f32[16,1152], index: 2, kind: output, shape index: {}]
  %s3 = sld [smem:[#allocation0]]
  $region26: #{tpu_custom_call.1} parent=0
    _
  %s5 = ssub.s32 1, %s3
  %s6 = scalar_select 0, %s5, %s3
  $region1: #{tpu_custom_call.1} parent=0
    #allocation2 [shape = 'u8[110592]{0}', space=vmem, size = 0x1b000, scoped, tag = 'input window, operand 0, single buffered']
    #allocation3 [shape = 's32[1]{0}', space=sflag, size = 0x4, scoped, tag = 'scoped memory for tpu_custom_call.1']
    #allocation4 [shape = 's32[1]{0}', space=sflag, size = 0x4, scoped, tag = 'scoped memory for tpu_custom_call.1']
    #allocation5 [shape = 'u8[4608]{0}', space=vmem, size = 0x1400, scoped, tag = 'input window, operand 1, single buffered']
    #allocation6 [shape = 's32[1]{0}', space=sflag, size = 0x4, scoped, tag = 'scoped memory for tpu_custom_call.1']
    #allocation7 [shape = 'u8[73728]{0}', space=vmem, size = 0x12000, scoped, tag = 'output window, operand 0, single buffered']
    %7 = vsyncpa [#allocation3], 0
    %8 = vsyncpa [#allocation6], 0
    %9 = vsyncpa [#allocation4], 0
    // Predicated region
    $region2: #{tpu_custom_call.1} parent=1 // pred_check
      _
    $region3: #{tpu_custom_call.1} parent=1 // pred_check_branch
      %11 = sbr.rel (0) target = $region5
    $region4: #{tpu_custom_call.1} parent=1 // pred_region
      %s13 = ssub.s32 3456, 3456
      %14 = vsyncadd [#allocation3], %s13
      %s15 = sshll.u32 [#allocation2], 4
      %s16 = int_to_ptr.vmem [resolvable:$true] %s15
      %21 = dma.hbm_to_vmem [thread:$0]  %s0, 3456, %s16, [#allocation3], 1152, 1152, 72
    $region5: #{tpu_custom_call.1} parent=1 // pred_fallthru
      _
    // Predicated region
    $region6: #{tpu_custom_call.1} parent=1 // pred_check
      _
    $region7: #{tpu_custom_call.1} parent=1 // pred_check_branch
      %23 = sbr.rel (0) target = $region9
    $region8: #{tpu_custom_call.1} parent=1 // pred_region
      %s25 = ssub.s32 144, 144
      %26 = vsyncadd [#allocation6], %s25
      %s28 = sshll.u32 [#allocation5], 4
      %s29 = int_to_ptr.vmem [resolvable:$true] %s28
      %31 = dma.hbm_to_vmem [thread:$0]  %s1, 144, %s29, [#allocation6]
    $region9: #{tpu_custom_call.1} parent=1 // pred_fallthru
      _
    // Predicated region
    $region10: #{tpu_custom_call.1} parent=1 // pred_check
      _
    $region11: #{tpu_custom_call.1} parent=1 // pred_check_branch
      %33 = sbr.rel (0) target = $region13
    $region12: #{tpu_custom_call.1} parent=1 // pred_region
      %34 = dma.done [#allocation3], 3456
    $region13: #{tpu_custom_call.1} parent=1 // pred_fallthru
      _
    // Predicated region
    $region14: #{tpu_custom_call.1} parent=1 // pred_check
      _
    $region15: #{tpu_custom_call.1} parent=1 // pred_check_branch
      %36 = sbr.rel (0) target = $region17
    $region16: #{tpu_custom_call.1} parent=1 // pred_region
      %37 = dma.done [#allocation6], 144
    $region17: #{tpu_custom_call.1} parent=1 // pred_fallthru
      _
    %v38 = vld [vmem:[#allocation5] sm:$0xff]
    %v39 = vld [vmem:[#allocation5 + $0x8] sm:$0x1]
    %v40 = vlaneseq
    %v41 = vshrl.u32 %v40, 7
    %v42 = vcvt.s32.f32 %v41
    %v43 = vmul.f32 %v42, 32.0
    %v46 = vlaneseq
    %v47 = vshrl.u32 %v46, 7
    %v48 = vsub.s32 0, %v47
    %v49 = vrot.slane %v38, %v48
    %v50 = vlaneseq
    %v51 = vshrl.u32 %v50, 7
    %v52 = vsub.s32 1, %v51
    %v53 = vrot.slane %v38, %v52
    %v54 = vlaneseq
    %v55 = vshrl.u32 %v54, 7
    %v56 = vsub.s32 2, %v55
    %v57 = vrot.slane %v38, %v56
    %v58 = vlaneseq
    %v59 = vshrl.u32 %v58, 7
    %v60 = vsub.s32 3, %v59
    %v61 = vrot.slane %v38, %v60
    %v62 = vlaneseq
    %v63 = vshrl.u32 %v62, 7
    %v64 = vsub.s32 4, %v63
    %v65 = vrot.slane %v38, %v64
    %v66 = vlaneseq
    %v67 = vshrl.u32 %v66, 7
    %v68 = vsub.s32 5, %v67
    %v69 = vrot.slane %v38, %v68
    %v70 = vlaneseq
    %v71 = vshrl.u32 %v70, 7
    %v72 = vsub.s32 6, %v71
    %v73 = vrot.slane %v38, %v72
    %v74 = vlaneseq
    %v75 = vshrl.u32 %v74, 7
    %v76 = vsub.s32 7, %v75
    %v77 = vrot.slane %v38, %v76
    %v78 = vlaneseq
    %v79 = vshrl.u32 %v78, 7
    %v80 = vsub.s32 0, %v79
    %v81 = vrot.slane %v39, %v80
    %v91 = vadd.f32 %v43, %v49
    %v92 = vadd.f32 %v43, %v53
    %v93 = vadd.f32 %v43, %v57
    %v94 = vadd.f32 %v43, %v61
    %v95 = vadd.f32 %v43, %v65
    %v96 = vadd.f32 %v43, %v69
    %v97 = vadd.f32 %v43, %v73
    %v98 = vadd.f32 %v43, %v77
    %v99 = vadd.f32 %v43, %v81
    %v100 = vmul.f32 %v91, 0.0625
    %v101 = vmul.f32 %v92, 0.0625
    %v102 = vmul.f32 %v93, 0.0625
    %v103 = vmul.f32 %v94, 0.0625
    %v104 = vmul.f32 %v95, 0.0625
    %v105 = vmul.f32 %v96, 0.0625
    %v106 = vmul.f32 %v97, 0.0625
    %v107 = vmul.f32 %v98, 0.0625
    %v108 = vmul.f32 %v99, 0.0625
    %v109 = vfloor.f32 %v100
    %v110 = vfloor.f32 %v101
    %v111 = vfloor.f32 %v102
    %v112 = vfloor.f32 %v103
    %v113 = vfloor.f32 %v104
    %v114 = vfloor.f32 %v105
    %v115 = vfloor.f32 %v106
    %v116 = vfloor.f32 %v107
    %v117 = vfloor.f32 %v108
    %v118 = vmul.f32 %v109, 16.0
    %v119 = vmul.f32 %v110, 16.0
    %v120 = vmul.f32 %v111, 16.0
    %v121 = vmul.f32 %v112, 16.0
    %v122 = vmul.f32 %v113, 16.0
    %v123 = vmul.f32 %v114, 16.0
    %v124 = vmul.f32 %v115, 16.0
    %v125 = vmul.f32 %v116, 16.0
    %v126 = vmul.f32 %v117, 16.0
    %v127 = vsub.f32 %v91, %v118
    %v128 = vsub.f32 %v92, %v119
    %v129 = vsub.f32 %v93, %v120
    %v130 = vsub.f32 %v94, %v121
    %v131 = vsub.f32 %v95, %v122
    %v132 = vsub.f32 %v96, %v123
    %v133 = vsub.f32 %v97, %v124
    %v134 = vsub.f32 %v98, %v125
    %v135 = vsub.f32 %v99, %v126
    %vm136 = vcmp.ge.f32.partialorder %v127, 16.0
    %vm137 = vcmp.ge.f32.partialorder %v128, 16.0
    %vm138 = vcmp.ge.f32.partialorder %v129, 16.0
    %vm139 = vcmp.ge.f32.partialorder %v130, 16.0
    %vm140 = vcmp.ge.f32.partialorder %v131, 16.0
    %vm141 = vcmp.ge.f32.partialorder %v132, 16.0
    %vm142 = vcmp.ge.f32.partialorder %v133, 16.0
    %vm143 = vcmp.ge.f32.partialorder %v134, 16.0
    %vm144 = vcmp.ge.f32.partialorder %v135, 16.0
    %v145 = vadd.f32 %v109, 1.0
    %v146 = vadd.f32 %v110, 1.0
    %v147 = vadd.f32 %v111, 1.0
    %v148 = vadd.f32 %v112, 1.0
    %v149 = vadd.f32 %v113, 1.0
    %v150 = vadd.f32 %v114, 1.0
    %v151 = vadd.f32 %v115, 1.0
    %v152 = vadd.f32 %v116, 1.0
    %v153 = vadd.f32 %v117, 1.0
    %v154 = vsel %vm136, %v145, %v109
    %v155 = vsel %vm137, %v146, %v110
    %v156 = vsel %vm138, %v147, %v111
    %v157 = vsel %vm139, %v148, %v112
    %v158 = vsel %vm140, %v149, %v113
    %v159 = vsel %vm141, %v150, %v114
    %v160 = vsel %vm142, %v151, %v115
    %v161 = vsel %vm143, %v152, %v116
    %v162 = vsel %vm144, %v153, %v117
    %vm163 = vcmp.lt.f32.partialorder %v127, 0.0
    %vm164 = vcmp.lt.f32.partialorder %v128, 0.0
    %vm165 = vcmp.lt.f32.partialorder %v129, 0.0
    %vm166 = vcmp.lt.f32.partialorder %v130, 0.0
    %vm167 = vcmp.lt.f32.partialorder %v131, 0.0
    %vm168 = vcmp.lt.f32.partialorder %v132, 0.0
    %vm169 = vcmp.lt.f32.partialorder %v133, 0.0
    %vm170 = vcmp.lt.f32.partialorder %v134, 0.0
    %vm171 = vcmp.lt.f32.partialorder %v135, 0.0
    %v172 = vsub.f32 %v154, 1.0
    %v173 = vsub.f32 %v155, 1.0
    %v174 = vsub.f32 %v156, 1.0
    %v175 = vsub.f32 %v157, 1.0
    %v176 = vsub.f32 %v158, 1.0
    %v177 = vsub.f32 %v159, 1.0
    %v178 = vsub.f32 %v160, 1.0
    %v179 = vsub.f32 %v161, 1.0
    %v180 = vsub.f32 %v162, 1.0
    %v181 = vsel %vm163, %v172, %v154
    %v182 = vsel %vm164, %v173, %v155
    %v183 = vsel %vm165, %v174, %v156
    %v184 = vsel %vm166, %v175, %v157
    %v185 = vsel %vm167, %v176, %v158
    %v186 = vsel %vm168, %v177, %v159
    %v187 = vsel %vm169, %v178, %v160
    %v188 = vsel %vm170, %v179, %v161
    %v189 = vsel %vm171, %v180, %v162
    %v190 = vmul.f32 %v181, 16.0
    %v191 = vmul.f32 %v182, 16.0
    %v192 = vmul.f32 %v183, 16.0
    %v193 = vmul.f32 %v184, 16.0
    %v194 = vmul.f32 %v185, 16.0
    %v195 = vmul.f32 %v186, 16.0
    %v196 = vmul.f32 %v187, 16.0
    %v197 = vmul.f32 %v188, 16.0
    %v198 = vmul.f32 %v189, 16.0
    %v199 = vsub.f32 %v91, %v190
    %v200 = vsub.f32 %v92, %v191
    %v201 = vsub.f32 %v93, %v192
    %v202 = vsub.f32 %v94, %v193
    %v203 = vsub.f32 %v95, %v194
    %v204 = vsub.f32 %v96, %v195
    %v205 = vsub.f32 %v97, %v196
    %v206 = vsub.f32 %v98, %v197
    %v207 = vsub.f32 %v99, %v198
    %v208 = vld [vmem:[#allocation2] ss:$8 sm:$0xf]
    %v209 = vld [vmem:[#allocation2] ss:$8 sm:$0xf0]
    %v210 = vor.u32 %v208, %v209
    %s211 = scalar_lea.vmem [#allocation2], 64
    %v212 = vld [vmem:[%s211] ss:$8 sm:$0x1]
    %v215 = vlaneseq
    %v216 = vshrl.u32 %v215, 7
    %v217 = vsub.s32 0, %v216
    %v218 = vrot.slane %v210, %v217
    %v219 = vlaneseq
    %v220 = vshrl.u32 %v219, 7
    %v221 = vsub.s32 1, %v220
    %v222 = vrot.slane %v210, %v221
    %v223 = vlaneseq
    %v224 = vshrl.u32 %v223, 7
    %v225 = vsub.s32 2, %v224
    %v226 = vrot.slane %v210, %v225
    %v227 = vlaneseq
    %v228 = vshrl.u32 %v227, 7
    %v229 = vsub.s32 3, %v228
    %v230 = vrot.slane %v210, %v229
    %v231 = vlaneseq
    %v232 = vshrl.u32 %v231, 7
    %v233 = vsub.s32 4, %v232
    %v234 = vrot.slane %v210, %v233
    %v235 = vlaneseq
    %v236 = vshrl.u32 %v235, 7
    %v237 = vsub.s32 5, %v236
    %v238 = vrot.slane %v210, %v237
    %v239 = vlaneseq
    %v240 = vshrl.u32 %v239, 7
    %v241 = vsub.s32 6, %v240
    %v242 = vrot.slane %v210, %v241
    %v243 = vlaneseq
    %v244 = vshrl.u32 %v243, 7
    %v245 = vsub.s32 7, %v244
    %v246 = vrot.slane %v210, %v245
    %v247 = vlaneseq
    %v248 = vshrl.u32 %v247, 7
    %v249 = vsub.s32 0, %v248
    %v250 = vrot.slane %v212, %v249
    %v260 = vmul.f32 %v181, %v218
    %v261 = vmul.f32 %v182, %v222
    %v262 = vmul.f32 %v183, %v226
    %v263 = vmul.f32 %v184, %v230
    %v264 = vmul.f32 %v185, %v234
    %v265 = vmul.f32 %v186, %v238
    %v266 = vmul.f32 %v187, %v242
    %v267 = vmul.f32 %v188, %v246
    %v268 = vmul.f32 %v189, %v250
    %s269 = scalar_lea.vmem [#allocation2], 1
    %v270 = vld [vmem:[%s269] ss:$8 sm:$0xf]
    %v271 = vld [vmem:[%s269] ss:$8 sm:$0xf0]
    %v272 = vor.u32 %v270, %v271
    %s273 = scalar_lea.vmem [#allocation2], 65
    %v274 = vld [vmem:[%s273] ss:$8 sm:$0x1]
    %v277 = vlaneseq
    %v278 = vshrl.u32 %v277, 7
    %v279 = vsub.s32 0, %v278
    %v280 = vrot.slane %v272, %v279
    %v281 = vlaneseq
    %v282 = vshrl.u32 %v281, 7
    %v283 = vsub.s32 1, %v282
    %v284 = vrot.slane %v272, %v283
    %v285 = vlaneseq
    %v286 = vshrl.u32 %v285, 7
    %v287 = vsub.s32 2, %v286
    %v288 = vrot.slane %v272, %v287
    %v289 = vlaneseq
    %v290 = vshrl.u32 %v289, 7
    %v291 = vsub.s32 3, %v290
    %v292 = vrot.slane %v272, %v291
    %v293 = vlaneseq
    %v294 = vshrl.u32 %v293, 7
    %v295 = vsub.s32 4, %v294
    %v296 = vrot.slane %v272, %v295
    %v297 = vlaneseq
    %v298 = vshrl.u32 %v297, 7
    %v299 = vsub.s32 5, %v298
    %v300 = vrot.slane %v272, %v299
    %v301 = vlaneseq
    %v302 = vshrl.u32 %v301, 7
    %v303 = vsub.s32 6, %v302
    %v304 = vrot.slane %v272, %v303
    %v305 = vlaneseq
    %v306 = vshrl.u32 %v305, 7
    %v307 = vsub.s32 7, %v306
    %v308 = vrot.slane %v272, %v307
    %v309 = vlaneseq
    %v310 = vshrl.u32 %v309, 7
    %v311 = vsub.s32 0, %v310
    %v312 = vrot.slane %v274, %v311
    %v322 = vmul.f32 %v199, %v280
    %v323 = vmul.f32 %v200, %v284
    %v324 = vmul.f32 %v201, %v288
    %v325 = vmul.f32 %v202, %v292
    %v326 = vmul.f32 %v203, %v296
    %v327 = vmul.f32 %v204, %v300
    %v328 = vmul.f32 %v205, %v304
    %v329 = vmul.f32 %v206, %v308
    %v330 = vmul.f32 %v207, %v312
    %v331 = vadd.f32 %v260, %v322
    %v332 = vadd.f32 %v261, %v323
    %v333 = vadd.f32 %v262, %v324
    %v334 = vadd.f32 %v263, %v325
    %v335 = vadd.f32 %v264, %v326
    %v336 = vadd.f32 %v265, %v327
    %v337 = vadd.f32 %v266, %v328
    %v338 = vadd.f32 %v267, %v329
    %v339 = vadd.f32 %v268, %v330
    %s340 = scalar_lea.vmem [#allocation2], 2
    %v341 = vld [vmem:[%s340] ss:$8 sm:$0xf]
    %v342 = vld [vmem:[%s340] ss:$8 sm:$0xf0]
    %v343 = vor.u32 %v341, %v342
    %s344 = scalar_lea.vmem [#allocation2], 66
    %v345 = vld [vmem:[%s344] ss:$8 sm:$0x1]
    %v348 = vlaneseq
    %v349 = vshrl.u32 %v348, 7
    %v350 = vsub.s32 0, %v349
    %v351 = vrot.slane %v343, %v350
    %v352 = vlaneseq
    %v353 = vshrl.u32 %v352, 7
    %v354 = vsub.s32 1, %v353
    %v355 = vrot.slane %v343, %v354
    %v356 = vlaneseq
    %v357 = vshrl.u32 %v356, 7
    %v358 = vsub.s32 2, %v357
    %v359 = vrot.slane %v343, %v358
    %v360 = vlaneseq
    %v361 = vshrl.u32 %v360, 7
    %v362 = vsub.s32 3, %v361
    %v363 = vrot.slane %v343, %v362
    %v364 = vlaneseq
    %v365 = vshrl.u32 %v364, 7
    %v366 = vsub.s32 4, %v365
    %v367 = vrot.slane %v343, %v366
    %v368 = vlaneseq
    %v369 = vshrl.u32 %v368, 7
    %v370 = vsub.s32 5, %v369
    %v371 = vrot.slane %v343, %v370
    %v372 = vlaneseq
    %v373 = vshrl.u32 %v372, 7
    %v374 = vsub.s32 6, %v373
    %v375 = vrot.slane %v343, %v374
    %v376 = vlaneseq
    %v377 = vshrl.u32 %v376, 7
    %v378 = vsub.s32 7, %v377
    %v379 = vrot.slane %v343, %v378
    %v380 = vlaneseq
    %v381 = vshrl.u32 %v380, 7
    %v382 = vsub.s32 0, %v381
    %v383 = vrot.slane %v345, %v382
    %v393 = vadd.f32 %v331, %v351
    %v394 = vadd.f32 %v332, %v355
    %v395 = vadd.f32 %v333, %v359
    %v396 = vadd.f32 %v334, %v363
    %v397 = vadd.f32 %v335, %v367
    %v398 = vadd.f32 %v336, %v371
    %v399 = vadd.f32 %v337, %v375
    %v400 = vadd.f32 %v338, %v379
    %v401 = vadd.f32 %v339, %v383
    %402 = vst [vmem:[#allocation7] sm:$0xff] %v393
    %403 = vst [vmem:[#allocation7 + $0x8] sm:$0xff] %v394
    %404 = vst [vmem:[#allocation7 + $0x10] sm:$0xff] %v395
    %405 = vst [vmem:[#allocation7 + $0x18] sm:$0xff] %v396
    %406 = vst [vmem:[#allocation7 + $0x20] sm:$0xff] %v397
    %407 = vst [vmem:[#allocation7 + $0x28] sm:$0xff] %v398
    %408 = vst [vmem:[#allocation7 + $0x30] sm:$0xff] %v399
    %409 = vst [vmem:[#allocation7 + $0x38] sm:$0xff] %v400
    %410 = vst [vmem:[#allocation7 + $0x40] sm:$0xff] %v401
    %v411 = vadd.f32 %v42, 8.0
    %v412 = vmul.f32 %v411, 32.0
    %v413 = vadd.f32 %v412, %v49
    %v414 = vadd.f32 %v412, %v53
    %v415 = vadd.f32 %v412, %v57
    %v416 = vadd.f32 %v412, %v61
    %v417 = vadd.f32 %v412, %v65
    %v418 = vadd.f32 %v412, %v69
    %v419 = vadd.f32 %v412, %v73
    %v420 = vadd.f32 %v412, %v77
    %v421 = vadd.f32 %v412, %v81
    %v422 = vsub.f32 %v413, 256.0
    %v423 = vsub.f32 %v414, 256.0
    %v424 = vsub.f32 %v415, 256.0
    %v425 = vsub.f32 %v416, 256.0
    %v426 = vsub.f32 %v417, 256.0
    %v427 = vsub.f32 %v418, 256.0
    %v428 = vsub.f32 %v419, 256.0
    %v429 = vsub.f32 %v420, 256.0
    %v430 = vsub.f32 %v421, 256.0
    %v431 = vmul.f32 %v422, 0.125
    %v432 = vmul.f32 %v423, 0.125
    %v433 = vmul.f32 %v424, 0.125
    %v434 = vmul.f32 %v425, 0.125
    %v435 = vmul.f32 %v426, 0.125
    %v436 = vmul.f32 %v427, 0.125
    %v437 = vmul.f32 %v428, 0.125
    %v438 = vmul.f32 %v429, 0.125
    %v439 = vmul.f32 %v430, 0.125
    %v440 = vfloor.f32 %v431
    %v441 = vfloor.f32 %v432
    %v442 = vfloor.f32 %v433
    %v443 = vfloor.f32 %v434
    %v444 = vfloor.f32 %v435
    %v445 = vfloor.f32 %v436
    %v446 = vfloor.f32 %v437
    %v447 = vfloor.f32 %v438
    %v448 = vfloor.f32 %v439
    %v449 = vmul.f32 %v440, 8.0
    %v450 = vmul.f32 %v441, 8.0
    %v451 = vmul.f32 %v442, 8.0
    %v452 = vmul.f32 %v443, 8.0
    %v453 = vmul.f32 %v444, 8.0
    %v454 = vmul.f32 %v445, 8.0
    %v455 = vmul.f32 %v446, 8.0
    %v456 = vmul.f32 %v447, 8.0
    %v457 = vmul.f32 %v448, 8.0
    %v458 = vsub.f32 %v422, %v449
    %v459 = vsub.f32 %v423, %v450
    %v460 = vsub.f32 %v424, %v451
    %v461 = vsub.f32 %v425, %v452
    %v462 = vsub.f32 %v426, %v453
    %v463 = vsub.f32 %v427, %v454
    %v464 = vsub.f32 %v428, %v455
    %v465 = vsub.f32 %v429, %v456
    %v466 = vsub.f32 %v430, %v457
    %vm467 = vcmp.ge.f32.partialorder %v458, 8.0
    %vm468 = vcmp.ge.f32.partialorder %v459, 8.0
    %vm469 = vcmp.ge.f32.partialorder %v460, 8.0
    %vm470 = vcmp.ge.f32.partialorder %v461, 8.0
    %vm471 = vcmp.ge.f32.partialorder %v462, 8.0
    %vm472 = vcmp.ge.f32.partialorder %v463, 8.0
    %vm473 = vcmp.ge.f32.partialorder %v464, 8.0
    %vm474 = vcmp.ge.f32.partialorder %v465, 8.0
    %vm475 = vcmp.ge.f32.partialorder %v466, 8.0
    %v476 = vadd.f32 %v440, 1.0
    %v477 = vadd.f32 %v441, 1.0
    %v478 = vadd.f32 %v442, 1.0
    %v479 = vadd.f32 %v443, 1.0
    %v480 = vadd.f32 %v444, 1.0
    %v481 = vadd.f32 %v445, 1.0
    %v482 = vadd.f32 %v446, 1.0
    %v483 = vadd.f32 %v447, 1.0
    %v484 = vadd.f32 %v448, 1.0
    %v485 = vsel %vm467, %v476, %v440
    %v486 = vsel %vm468, %v477, %v441
    %v487 = vsel %vm469, %v478, %v442
    %v488 = vsel %vm470, %v479, %v443
    %v489 = vsel %vm471, %v480, %v444
    %v490 = vsel %vm472, %v481, %v445
    %v491 = vsel %vm473, %v482, %v446
    %v492 = vsel %vm474, %v483, %v447
    %v493 = vsel %vm475, %v484, %v448
    %vm494 = vcmp.lt.f32.partialorder %v458, 0.0
    %vm495 = vcmp.lt.f32.partialorder %v459, 0.0
    %vm496 = vcmp.lt.f32.partialorder %v460, 0.0
    %vm497 = vcmp.lt.f32.partialorder %v461, 0.0
    %vm498 = vcmp.lt.f32.partialorder %v462, 0.0
    %vm499 = vcmp.lt.f32.partialorder %v463, 0.0
    %vm500 = vcmp.lt.f32.partialorder %v464, 0.0
    %vm501 = vcmp.lt.f32.partialorder %v465, 0.0
    %vm502 = vcmp.lt.f32.partialorder %v466, 0.0
    %v503 = vsub.f32 %v485, 1.0
    %v504 = vsub.f32 %v486, 1.0
    %v505 = vsub.f32 %v487, 1.0
    %v506 = vsub.f32 %v488, 1.0
    %v507 = vsub.f32 %v489, 1.0
    %v508 = vsub.f32 %v490, 1.0
    %v509 = vsub.f32 %v491, 1.0
    %v510 = vsub.f32 %v492, 1.0
    %v511 = vsub.f32 %v493, 1.0
    %v512 = vsel %vm494, %v503, %v485
    %v513 = vsel %vm495, %v504, %v486
    %v514 = vsel %vm496, %v505, %v487
    %v515 = vsel %vm497, %v506, %v488
    %v516 = vsel %vm498, %v507, %v489
    %v517 = vsel %vm499, %v508, %v490
    %v518 = vsel %vm500, %v509, %v491
    %v519 = vsel %vm501, %v510, %v492
    %v520 = vsel %vm502, %v511, %v493
    %v521 = vmul.f32 %v512, 8.0
    %v522 = vmul.f32 %v513, 8.0
    %v523 = vmul.f32 %v514, 8.0
    %v524 = vmul.f32 %v515, 8.0
    %v525 = vmul.f32 %v516, 8.0
    %v526 = vmul.f32 %v517, 8.0
    %v527 = vmul.f32 %v518, 8.0
    %v528 = vmul.f32 %v519, 8.0
    %v529 = vmul.f32 %v520, 8.0
    %v530 = vsub.f32 %v422, %v521
    %v531 = vsub.f32 %v423, %v522
    %v532 = vsub.f32 %v424, %v523
    %v533 = vsub.f32 %v425, %v524
    %v534 = vsub.f32 %v426, %v525
    %v535 = vsub.f32 %v427, %v526
    %v536 = vsub.f32 %v428, %v527
    %v537 = vsub.f32 %v429, %v528
    %v538 = vsub.f32 %v430, %v529
    %s539 = scalar_lea.vmem [#allocation2], 4
    %v540 = vld [vmem:[%s539] ss:$8 sm:$0xf]
    %v541 = vld [vmem:[%s539] ss:$8 sm:$0xf0]
    %v542 = vor.u32 %v540, %v541
    %s543 = scalar_lea.vmem [#allocation2], 68
    %v544 = vld [vmem:[%s543] ss:$8 sm:$0x1]
    %v547 = vlaneseq
    %v548 = vshrl.u32 %v547, 7
    %v549 = vsub.s32 0, %v548
    %v550 = vrot.slane %v542, %v549
    %v551 = vlaneseq
    %v552 = vshrl.u32 %v551, 7
    %v553 = vsub.s32 1, %v552
    %v554 = vrot.slane %v542, %v553
    %v555 = vlaneseq
    %v556 = vshrl.u32 %v555, 7
    %v557 = vsub.s32 2, %v556
    %v558 = vrot.slane %v542, %v557
    %v559 = vlaneseq
    %v560 = vshrl.u32 %v559, 7
    %v561 = vsub.s32 3, %v560
    %v562 = vrot.slane %v542, %v561
    %v563 = vlaneseq
    %v564 = vshrl.u32 %v563, 7
    %v565 = vsub.s32 4, %v564
    %v566 = vrot.slane %v542, %v565
    %v567 = vlaneseq
    %v568 = vshrl.u32 %v567, 7
    %v569 = vsub.s32 5, %v568
    %v570 = vrot.slane %v542, %v569
    %v571 = vlaneseq
    %v572 = vshrl.u32 %v571, 7
    %v573 = vsub.s32 6, %v572
    %v574 = vrot.slane %v542, %v573
    %v575 = vlaneseq
    %v576 = vshrl.u32 %v575, 7
    %v577 = vsub.s32 7, %v576
    %v578 = vrot.slane %v542, %v577
    %v579 = vlaneseq
    %v580 = vshrl.u32 %v579, 7
    %v581 = vsub.s32 0, %v580
    %v582 = vrot.slane %v544, %v581
    %v592 = vmul.f32 %v512, %v550
    %v593 = vmul.f32 %v513, %v554
    %v594 = vmul.f32 %v514, %v558
    %v595 = vmul.f32 %v515, %v562
    %v596 = vmul.f32 %v516, %v566
    %v597 = vmul.f32 %v517, %v570
    %v598 = vmul.f32 %v518, %v574
    %v599 = vmul.f32 %v519, %v578
    %v600 = vmul.f32 %v520, %v582
    %s601 = scalar_lea.vmem [#allocation2], 5
    %v602 = vld [vmem:[%s601] ss:$8 sm:$0xf]
    %v603 = vld [vmem:[%s601] ss:$8 sm:$0xf0]
    %v604 = vor.u32 %v602, %v603
    %s605 = scalar_lea.vmem [#allocation2], 69
    %v606 = vld [vmem:[%s605] ss:$8 sm:$0x1]
    %v609 = vlaneseq
    %v610 = vshrl.u32 %v609, 7
    %v611 = vsub.s32 0, %v610
    %v612 = vrot.slane %v604, %v611
    %v613 = vlaneseq
    %v614 = vshrl.u32 %v613, 7
    %v615 = vsub.s32 1, %v614
    %v616 = vrot.slane %v604, %v615
    %v617 = vlaneseq
    %v618 = vshrl.u32 %v617, 7
    %v619 = vsub.s32 2, %v618
    %v620 = vrot.slane %v604, %v619
    %v621 = vlaneseq
    %v622 = vshrl.u32 %v621, 7
    %v623 = vsub.s32 3, %v622
    %v624 = vrot.slane %v604, %v623
    %v625 = vlaneseq
    %v626 = vshrl.u32 %v625, 7
    %v627 = vsub.s32 4, %v626
    %v628 = vrot.slane %v604, %v627
    %v629 = vlaneseq
    %v630 = vshrl.u32 %v629, 7
    %v631 = vsub.s32 5, %v630
    %v632 = vrot.slane %v604, %v631
    %v633 = vlaneseq
    %v634 = vshrl.u32 %v633, 7
    %v635 = vsub.s32 6, %v634
    %v636 = vrot.slane %v604, %v635
    %v637 = vlaneseq
    %v638 = vshrl.u32 %v637, 7
    %v639 = vsub.s32 7, %v638
    %v640 = vrot.slane %v604, %v639
    %v641 = vlaneseq
    %v642 = vshrl.u32 %v641, 7
    %v643 = vsub.s32 0, %v642
    %v644 = vrot.slane %v606, %v643
    %v654 = vmul.f32 %v530, %v612
    %v655 = vmul.f32 %v531, %v616
    %v656 = vmul.f32 %v532, %v620
    %v657 = vmul.f32 %v533, %v624
    %v658 = vmul.f32 %v534, %v628
    %v659 = vmul.f32 %v535, %v632
    %v660 = vmul.f32 %v536, %v636
    %v661 = vmul.f32 %v537, %v640
    %v662 = vmul.f32 %v538, %v644
    %v663 = vadd.f32 %v592, %v654
    %v664 = vadd.f32 %v593, %v655
    %v665 = vadd.f32 %v594, %v656
    %v666 = vadd.f32 %v595, %v657
    %v667 = vadd.f32 %v596, %v658
    %v668 = vadd.f32 %v597, %v659
    %v669 = vadd.f32 %v598, %v660
    %v670 = vadd.f32 %v599, %v661
    %v671 = vadd.f32 %v600, %v662
    %s672 = scalar_lea.vmem [#allocation2], 6
    %v673 = vld [vmem:[%s672] ss:$8 sm:$0xf]
    %v674 = vld [vmem:[%s672] ss:$8 sm:$0xf0]
    %v675 = vor.u32 %v673, %v674
    %s676 = scalar_lea.vmem [#allocation2], 70
    %v677 = vld [vmem:[%s676] ss:$8 sm:$0x1]
    %v680 = vlaneseq
    %v681 = vshrl.u32 %v680, 7
    %v682 = vsub.s32 0, %v681
    %v683 = vrot.slane %v675, %v682
    %v684 = vlaneseq
    %v685 = vshrl.u32 %v684, 7
    %v686 = vsub.s32 1, %v685
    %v687 = vrot.slane %v675, %v686
    %v688 = vlaneseq
    %v689 = vshrl.u32 %v688, 7
    %v690 = vsub.s32 2, %v689
    %v691 = vrot.slane %v675, %v690
    %v692 = vlaneseq
    %v693 = vshrl.u32 %v692, 7
    %v694 = vsub.s32 3, %v693
    %v695 = vrot.slane %v675, %v694
    %v696 = vlaneseq
    %v697 = vshrl.u32 %v696, 7
    %v698 = vsub.s32 4, %v697
    %v699 = vrot.slane %v675, %v698
    %v700 = vlaneseq
    %v701 = vshrl.u32 %v700, 7
    %v702 = vsub.s32 5, %v701
    %v703 = vrot.slane %v675, %v702
    %v704 = vlaneseq
    %v705 = vshrl.u32 %v704, 7
    %v706 = vsub.s32 6, %v705
    %v707 = vrot.slane %v675, %v706
    %v708 = vlaneseq
    %v709 = vshrl.u32 %v708, 7
    %v710 = vsub.s32 7, %v709
    %v711 = vrot.slane %v675, %v710
    %v712 = vlaneseq
    %v713 = vshrl.u32 %v712, 7
    %v714 = vsub.s32 0, %v713
    %v715 = vrot.slane %v677, %v714
    %v725 = vadd.f32 %v663, %v683
    %v726 = vadd.f32 %v664, %v687
    %v727 = vadd.f32 %v665, %v691
    %v728 = vadd.f32 %v666, %v695
    %v729 = vadd.f32 %v667, %v699
    %v730 = vadd.f32 %v668, %v703
    %v731 = vadd.f32 %v669, %v707
    %v732 = vadd.f32 %v670, %v711
    %v733 = vadd.f32 %v671, %v715
    %vm734 = vcmp.ge.f32.partialorder %v422, 0.0
    %vm735 = vcmp.ge.f32.partialorder %v423, 0.0
    %vm736 = vcmp.ge.f32.partialorder %v424, 0.0
    %vm737 = vcmp.ge.f32.partialorder %v425, 0.0
    %vm738 = vcmp.ge.f32.partialorder %v426, 0.0
    %vm739 = vcmp.ge.f32.partialorder %v427, 0.0
    %vm740 = vcmp.ge.f32.partialorder %v428, 0.0
    %vm741 = vcmp.ge.f32.partialorder %v429, 0.0
    %vm742 = vcmp.ge.f32.partialorder %v430, 0.0
    %vm743 = vcmp.lt.f32.partialorder %v422, 64.0
    %vm744 = vcmp.lt.f32.partialorder %v423, 64.0
    %vm745 = vcmp.lt.f32.partialorder %v424, 64.0
    %vm746 = vcmp.lt.f32.partialorder %v425, 64.0
    %vm747 = vcmp.lt.f32.partialorder %v426, 64.0
    %vm748 = vcmp.lt.f32.partialorder %v427, 64.0
    %vm749 = vcmp.lt.f32.partialorder %v428, 64.0
    %vm750 = vcmp.lt.f32.partialorder %v429, 64.0
    %vm751 = vcmp.lt.f32.partialorder %v430, 64.0
    %vm752 = vmand %vm734, %vm743
    %vm753 = vmand %vm735, %vm744
    %vm754 = vmand %vm736, %vm745
    %vm755 = vmand %vm737, %vm746
    %vm756 = vmand %vm738, %vm747
    %vm757 = vmand %vm739, %vm748
    %vm758 = vmand %vm740, %vm749
    %vm759 = vmand %vm741, %vm750
    %vm760 = vmand %vm742, %vm751
    %v761 = vsel %vm752, %v725, 0.0
    %v762 = vsel %vm753, %v726, 0.0
    %v763 = vsel %vm754, %v727, 0.0
    %v764 = vsel %vm755, %v728, 0.0
    %v765 = vsel %vm756, %v729, 0.0
    %v766 = vsel %vm757, %v730, 0.0
    %v767 = vsel %vm758, %v731, 0.0
    %v768 = vsel %vm759, %v732, 0.0
    %v769 = vsel %vm760, %v733, 0.0
    %v770 = vadd.f32 %v761, 0.0
    %v771 = vadd.f32 %v762, 0.0
    %v772 = vadd.f32 %v763, 0.0
    %v773 = vadd.f32 %v764, 0.0
    %v774 = vadd.f32 %v765, 0.0
    %v775 = vadd.f32 %v766, 0.0
    %v776 = vadd.f32 %v767, 0.0
    %v777 = vadd.f32 %v768, 0.0
    %v778 = vadd.f32 %v769, 0.0
    %v779 = vsub.f32 %v413, 320.0
    %v780 = vsub.f32 %v414, 320.0
    %v781 = vsub.f32 %v415, 320.0
    %v782 = vsub.f32 %v416, 320.0
    %v783 = vsub.f32 %v417, 320.0
    %v784 = vsub.f32 %v418, 320.0
    %v785 = vsub.f32 %v419, 320.0
    %v786 = vsub.f32 %v420, 320.0
    %v787 = vsub.f32 %v421, 320.0
    %v788 = vmul.f32 %v779, 0.25
    %v789 = vmul.f32 %v780, 0.25
    %v790 = vmul.f32 %v781, 0.25
    %v791 = vmul.f32 %v782, 0.25
    %v792 = vmul.f32 %v783, 0.25
    %v793 = vmul.f32 %v784, 0.25
    %v794 = vmul.f32 %v785, 0.25
    %v795 = vmul.f32 %v786, 0.25
    %v796 = vmul.f32 %v787, 0.25
    %v797 = vfloor.f32 %v788
    %v798 = vfloor.f32 %v789
    %v799 = vfloor.f32 %v790
    %v800 = vfloor.f32 %v791
    %v801 = vfloor.f32 %v792
    %v802 = vfloor.f32 %v793
    %v803 = vfloor.f32 %v794
    %v804 = vfloor.f32 %v795
    %v805 = vfloor.f32 %v796
    %v806 = vmul.f32 %v797, 4.0
    %v807 = vmul.f32 %v798, 4.0
    %v808 = vmul.f32 %v799, 4.0
    %v809 = vmul.f32 %v800, 4.0
    %v810 = vmul.f32 %v801, 4.0
    %v811 = vmul.f32 %v802, 4.0
    %v812 = vmul.f32 %v803, 4.0
    %v813 = vmul.f32 %v804, 4.0
    %v814 = vmul.f32 %v805, 4.0
    %v815 = vsub.f32 %v779, %v806
    %v816 = vsub.f32 %v780, %v807
    %v817 = vsub.f32 %v781, %v808
    %v818 = vsub.f32 %v782, %v809
    %v819 = vsub.f32 %v783, %v810
    %v820 = vsub.f32 %v784, %v811
    %v821 = vsub.f32 %v785, %v812
    %v822 = vsub.f32 %v786, %v813
    %v823 = vsub.f32 %v787, %v814
    %vm824 = vcmp.ge.f32.partialorder %v815, 4.0
    %vm825 = vcmp.ge.f32.partialorder %v816, 4.0
    %vm826 = vcmp.ge.f32.partialorder %v817, 4.0
    %vm827 = vcmp.ge.f32.partialorder %v818, 4.0
    %vm828 = vcmp.ge.f32.partialorder %v819, 4.0
    %vm829 = vcmp.ge.f32.partialorder %v820, 4.0
    %vm830 = vcmp.ge.f32.partialorder %v821, 4.0
    %vm831 = vcmp.ge.f32.partialorder %v822, 4.0
    %vm832 = vcmp.ge.f32.partialorder %v823, 4.0
    %v833 = vadd.f32 %v797, 1.0
    %v834 = vadd.f32 %v798, 1.0
    %v835 = vadd.f32 %v799, 1.0
    %v836 = vadd.f32 %v800, 1.0
    %v837 = vadd.f32 %v801, 1.0
    %v838 = vadd.f32 %v802, 1.0
    %v839 = vadd.f32 %v803, 1.0
    %v840 = vadd.f32 %v804, 1.0
    %v841 = vadd.f32 %v805, 1.0
    %v842 = vsel %vm824, %v833, %v797
    %v843 = vsel %vm825, %v834, %v798
    %v844 = vsel %vm826, %v835, %v799
    %v845 = vsel %vm827, %v836, %v800
    %v846 = vsel %vm828, %v837, %v801
    %v847 = vsel %vm829, %v838, %v802
    %v848 = vsel %vm830, %v839, %v803
    %v849 = vsel %vm831, %v840, %v804
    %v850 = vsel %vm832, %v841, %v805
    %vm851 = vcmp.lt.f32.partialorder %v815, 0.0
    %vm852 = vcmp.lt.f32.partialorder %v816, 0.0
    %vm853 = vcmp.lt.f32.partialorder %v817, 0.0
    %vm854 = vcmp.lt.f32.partialorder %v818, 0.0
    %vm855 = vcmp.lt.f32.partialorder %v819, 0.0
    %vm856 = vcmp.lt.f32.partialorder %v820, 0.0
    %vm857 = vcmp.lt.f32.partialorder %v821, 0.0
    %vm858 = vcmp.lt.f32.partialorder %v822, 0.0
    %vm859 = vcmp.lt.f32.partialorder %v823, 0.0
    %v860 = vsub.f32 %v842, 1.0
    %v861 = vsub.f32 %v843, 1.0
    %v862 = vsub.f32 %v844, 1.0
    %v863 = vsub.f32 %v845, 1.0
    %v864 = vsub.f32 %v846, 1.0
    %v865 = vsub.f32 %v847, 1.0
    %v866 = vsub.f32 %v848, 1.0
    %v867 = vsub.f32 %v849, 1.0
    %v868 = vsub.f32 %v850, 1.0
    %v869 = vsel %vm851, %v860, %v842
    %v870 = vsel %vm852, %v861, %v843
    %v871 = vsel %vm853, %v862, %v844
    %v872 = vsel %vm854, %v863, %v845
    %v873 = vsel %vm855, %v864, %v846
    %v874 = vsel %vm856, %v865, %v847
    %v875 = vsel %vm857, %v866, %v848
    %v876 = vsel %vm858, %v867, %v849
    %v877 = vsel %vm859, %v868, %v850
    %v878 = vmul.f32 %v869, 4.0
    %v879 = vmul.f32 %v870, 4.0
    %v880 = vmul.f32 %v871, 4.0
    %v881 = vmul.f32 %v872, 4.0
    %v882 = vmul.f32 %v873, 4.0
    %v883 = vmul.f32 %v874, 4.0
    %v884 = vmul.f32 %v875, 4.0
    %v885 = vmul.f32 %v876, 4.0
    %v886 = vmul.f32 %v877, 4.0
    %v887 = vsub.f32 %v779, %v878
    %v888 = vsub.f32 %v780, %v879
    %v889 = vsub.f32 %v781, %v880
    %v890 = vsub.f32 %v782, %v881
    %v891 = vsub.f32 %v783, %v882
    %v892 = vsub.f32 %v784, %v883
    %v893 = vsub.f32 %v785, %v884
    %v894 = vsub.f32 %v786, %v885
    %v895 = vsub.f32 %v787, %v886
    %s896 = scalar_lea.vmem [#allocation2], 72
    %v897 = vld [vmem:[%s896] ss:$8 sm:$0xf]
    %v898 = vld [vmem:[%s896] ss:$8 sm:$0xf0]
    %v899 = vor.u32 %v897, %v898
    %s900 = scalar_lea.vmem [#allocation2], 136
    %v901 = vld [vmem:[%s900] ss:$8 sm:$0x1]
    %v904 = vlaneseq
    %v905 = vshrl.u32 %v904, 7
    %v906 = vsub.s32 0, %v905
    %v907 = vrot.slane %v899, %v906
    %v908 = vlaneseq
    %v909 = vshrl.u32 %v908, 7
    %v910 = vsub.s32 1, %v909
    %v911 = vrot.slane %v899, %v910
    %v912 = vlaneseq
    %v913 = vshrl.u32 %v912, 7
    %v914 = vsub.s32 2, %v913
    %v915 = vrot.slane %v899, %v914
    %v916 = vlaneseq
    %v917 = vshrl.u32 %v916, 7
    %v918 = vsub.s32 3, %v917
    %v919 = vrot.slane %v899, %v918
    %v920 = vlaneseq
    %v921 = vshrl.u32 %v920, 7
    %v922 = vsub.s32 4, %v921
    %v923 = vrot.slane %v899, %v922
    %v924 = vlaneseq
    %v925 = vshrl.u32 %v924, 7
    %v926 = vsub.s32 5, %v925
    %v927 = vrot.slane %v899, %v926
    %v928 = vlaneseq
    %v929 = vshrl.u32 %v928, 7
    %v930 = vsub.s32 6, %v929
    %v931 = vrot.slane %v899, %v930
    %v932 = vlaneseq
    %v933 = vshrl.u32 %v932, 7
    %v934 = vsub.s32 7, %v933
    %v935 = vrot.slane %v899, %v934
    %v936 = vlaneseq
    %v937 = vshrl.u32 %v936, 7
    %v938 = vsub.s32 0, %v937
    %v939 = vrot.slane %v901, %v938
    %v949 = vmul.f32 %v869, %v907
    %v950 = vmul.f32 %v870, %v911
    %v951 = vmul.f32 %v871, %v915
    %v952 = vmul.f32 %v872, %v919
    %v953 = vmul.f32 %v873, %v923
    %v954 = vmul.f32 %v874, %v927
    %v955 = vmul.f32 %v875, %v931
    %v956 = vmul.f32 %v876, %v935
    %v957 = vmul.f32 %v877, %v939
    %s958 = scalar_lea.vmem [#allocation2], 73
    %v959 = vld [vmem:[%s958] ss:$8 sm:$0xf]
    %v960 = vld [vmem:[%s958] ss:$8 sm:$0xf0]
    %v961 = vor.u32 %v959, %v960
    %s962 = scalar_lea.vmem [#allocation2], 137
    %v963 = vld [vmem:[%s962] ss:$8 sm:$0x1]
    %v966 = vlaneseq
    %v967 = vshrl.u32 %v966, 7
    %v968 = vsub.s32 0, %v967
    %v969 = vrot.slane %v961, %v968
    %v970 = vlaneseq
    %v971 = vshrl.u32 %v970, 7
    %v972 = vsub.s32 1, %v971
    %v973 = vrot.slane %v961, %v972
    %v974 = vlaneseq
    %v975 = vshrl.u32 %v974, 7
    %v976 = vsub.s32 2, %v975
    %v977 = vrot.slane %v961, %v976
    %v978 = vlaneseq
    %v979 = vshrl.u32 %v978, 7
    %v980 = vsub.s32 3, %v979
    %v981 = vrot.slane %v961, %v980
    %v982 = vlaneseq
    %v983 = vshrl.u32 %v982, 7
    %v984 = vsub.s32 4, %v983
    %v985 = vrot.slane %v961, %v984
    %v986 = vlaneseq
    %v987 = vshrl.u32 %v986, 7
    %v988 = vsub.s32 5, %v987
    %v989 = vrot.slane %v961, %v988
    %v990 = vlaneseq
    %v991 = vshrl.u32 %v990, 7
    %v992 = vsub.s32 6, %v991
    %v993 = vrot.slane %v961, %v992
    %v994 = vlaneseq
    %v995 = vshrl.u32 %v994, 7
    %v996 = vsub.s32 7, %v995
    %v997 = vrot.slane %v961, %v996
    %v998 = vlaneseq
    %v999 = vshrl.u32 %v998, 7
    %v1000 = vsub.s32 0, %v999
    %v1001 = vrot.slane %v963, %v1000
    %v1011 = vmul.f32 %v887, %v969
    %v1012 = vmul.f32 %v888, %v973
    %v1013 = vmul.f32 %v889, %v977
    %v1014 = vmul.f32 %v890, %v981
    %v1015 = vmul.f32 %v891, %v985
    %v1016 = vmul.f32 %v892, %v989
    %v1017 = vmul.f32 %v893, %v993
    %v1018 = vmul.f32 %v894, %v997
    %v1019 = vmul.f32 %v895, %v1001
    %v1020 = vadd.f32 %v949, %v1011
    %v1021 = vadd.f32 %v950, %v1012
    %v1022 = vadd.f32 %v951, %v1013
    %v1023 = vadd.f32 %v952, %v1014
    %v1024 = vadd.f32 %v953, %v1015
    %v1025 = vadd.f32 %v954, %v1016
    %v1026 = vadd.f32 %v955, %v1017
    %v1027 = vadd.f32 %v956, %v1018
    %v1028 = vadd.f32 %v957, %v1019
    %s1029 = scalar_lea.vmem [#allocation2], 74
    %v1030 = vld [vmem:[%s1029] ss:$8 sm:$0xf]
    %v1031 = vld [vmem:[%s1029] ss:$8 sm:$0xf0]
    %v1032 = vor.u32 %v1030, %v1031
    %s1033 = scalar_lea.vmem [#allocation2], 138
    %v1034 = vld [vmem:[%s1033] ss:$8 sm:$0x1]
    %v1037 = vlaneseq
    %v1038 = vshrl.u32 %v1037, 7
    %v1039 = vsub.s32 0, %v1038
    %v1040 = vrot.slane %v1032, %v1039
    %v1041 = vlaneseq
    %v1042 = vshrl.u32 %v1041, 7
    %v1043 = vsub.s32 1, %v1042
    %v1044 = vrot.slane %v1032, %v1043
    %v1045 = vlaneseq
    %v1046 = vshrl.u32 %v1045, 7
    %v1047 = vsub.s32 2, %v1046
    %v1048 = vrot.slane %v1032, %v1047
    %v1049 = vlaneseq
    %v1050 = vshrl.u32 %v1049, 7
    %v1051 = vsub.s32 3, %v1050
    %v1052 = vrot.slane %v1032, %v1051
    %v1053 = vlaneseq
    %v1054 = vshrl.u32 %v1053, 7
    %v1055 = vsub.s32 4, %v1054
    %v1056 = vrot.slane %v1032, %v1055
    %v1057 = vlaneseq
    %v1058 = vshrl.u32 %v1057, 7
    %v1059 = vsub.s32 5, %v1058
    %v1060 = vrot.slane %v1032, %v1059
    %v1061 = vlaneseq
    %v1062 = vshrl.u32 %v1061, 7
    %v1063 = vsub.s32 6, %v1062
    %v1064 = vrot.slane %v1032, %v1063
    %v1065 = vlaneseq
    %v1066 = vshrl.u32 %v1065, 7
    %v1067 = vsub.s32 7, %v1066
    %v1068 = vrot.slane %v1032, %v1067
    %v1069 = vlaneseq
    %v1070 = vshrl.u32 %v1069, 7
    %v1071 = vsub.s32 0, %v1070
    %v1072 = vrot.slane %v1034, %v1071
    %v1082 = vadd.f32 %v1020, %v1040
    %v1083 = vadd.f32 %v1021, %v1044
    %v1084 = vadd.f32 %v1022, %v1048
    %v1085 = vadd.f32 %v1023, %v1052
    %v1086 = vadd.f32 %v1024, %v1056
    %v1087 = vadd.f32 %v1025, %v1060
    %v1088 = vadd.f32 %v1026, %v1064
    %v1089 = vadd.f32 %v1027, %v1068
    %v1090 = vadd.f32 %v1028, %v1072
    %vm1091 = vcmp.ge.f32.partialorder %v779, 0.0
    %vm1092 = vcmp.ge.f32.partialorder %v780, 0.0
    %vm1093 = vcmp.ge.f32.partialorder %v781, 0.0
    %vm1094 = vcmp.ge.f32.partialorder %v782, 0.0
    %vm1095 = vcmp.ge.f32.partialorder %v783, 0.0
    %vm1096 = vcmp.ge.f32.partialorder %v784, 0.0
    %vm1097 = vcmp.ge.f32.partialorder %v785, 0.0
    %vm1098 = vcmp.ge.f32.partialorder %v786, 0.0
    %vm1099 = vcmp.ge.f32.partialorder %v787, 0.0
    %vm1100 = vcmp.lt.f32.partialorder %v779, 16.0
    %vm1101 = vcmp.lt.f32.partialorder %v780, 16.0
    %vm1102 = vcmp.lt.f32.partialorder %v781, 16.0
    %vm1103 = vcmp.lt.f32.partialorder %v782, 16.0
    %vm1104 = vcmp.lt.f32.partialorder %v783, 16.0
    %vm1105 = vcmp.lt.f32.partialorder %v784, 16.0
    %vm1106 = vcmp.lt.f32.partialorder %v785, 16.0
    %vm1107 = vcmp.lt.f32.partialorder %v786, 16.0
    %vm1108 = vcmp.lt.f32.partialorder %v787, 16.0
    %vm1109 = vmand %vm1091, %vm1100
    %vm1110 = vmand %vm1092, %vm1101
    %vm1111 = vmand %vm1093, %vm1102
    %vm1112 = vmand %vm1094, %vm1103
    %vm1113 = vmand %vm1095, %vm1104
    %vm1114 = vmand %vm1096, %vm1105
    %vm1115 = vmand %vm1097, %vm1106
    %vm1116 = vmand %vm1098, %vm1107
    %vm1117 = vmand %vm1099, %vm1108
    %v1118 = vsel %vm1109, %v1082, 0.0
    %v1119 = vsel %vm1110, %v1083, 0.0
    %v1120 = vsel %vm1111, %v1084, 0.0
    %v1121 = vsel %vm1112, %v1085, 0.0
    %v1122 = vsel %vm1113, %v1086, 0.0
    %v1123 = vsel %vm1114, %v1087, 0.0
    %v1124 = vsel %vm1115, %v1088, 0.0
    %v1125 = vsel %vm1116, %v1089, 0.0
    %v1126 = vsel %vm1117, %v1090, 0.0
    %v1127 = vadd.f32 %v770, %v1118
    %v1128 = vadd.f32 %v771, %v1119
    %v1129 = vadd.f32 %v772, %v1120
    %v1130 = vadd.f32 %v773, %v1121
    %v1131 = vadd.f32 %v774, %v1122
    %v1132 = vadd.f32 %v775, %v1123
    %v1133 = vadd.f32 %v776, %v1124
    %v1134 = vadd.f32 %v777, %v1125
    %v1135 = vadd.f32 %v778, %v1126
    %v1136 = vsub.f32 %v413, 336.0
    %v1137 = vsub.f32 %v414, 336.0
    %v1138 = vsub.f32 %v415, 336.0
    %v1139 = vsub.f32 %v416, 336.0
    %v1140 = vsub.f32 %v417, 336.0
    %v1141 = vsub.f32 %v418, 336.0
    %v1142 = vsub.f32 %v419, 336.0
    %v1143 = vsub.f32 %v420, 336.0
    %v1144 = vsub.f32 %v421, 336.0
    %v1145 = vmul.f32 %v1136, 0.5
    %v1146 = vmul.f32 %v1137, 0.5
    %v1147 = vmul.f32 %v1138, 0.5
    %v1148 = vmul.f32 %v1139, 0.5
    %v1149 = vmul.f32 %v1140, 0.5
    %v1150 = vmul.f32 %v1141, 0.5
    %v1151 = vmul.f32 %v1142, 0.5
    %v1152 = vmul.f32 %v1143, 0.5
    %v1153 = vmul.f32 %v1144, 0.5
    %v1154 = vfloor.f32 %v1145
    %v1155 = vfloor.f32 %v1146
    %v1156 = vfloor.f32 %v1147
    %v1157 = vfloor.f32 %v1148
    %v1158 = vfloor.f32 %v1149
    %v1159 = vfloor.f32 %v1150
    %v1160 = vfloor.f32 %v1151
    %v1161 = vfloor.f32 %v1152
    %v1162 = vfloor.f32 %v1153
    %v1163 = vmul.f32 %v1154, 2.0
    %v1164 = vmul.f32 %v1155, 2.0
    %v1165 = vmul.f32 %v1156, 2.0
    %v1166 = vmul.f32 %v1157, 2.0
    %v1167 = vmul.f32 %v1158, 2.0
    %v1168 = vmul.f32 %v1159, 2.0
    %v1169 = vmul.f32 %v1160, 2.0
    %v1170 = vmul.f32 %v1161, 2.0
    %v1171 = vmul.f32 %v1162, 2.0
    %v1172 = vsub.f32 %v1136, %v1163
    %v1173 = vsub.f32 %v1137, %v1164
    %v1174 = vsub.f32 %v1138, %v1165
    %v1175 = vsub.f32 %v1139, %v1166
    %v1176 = vsub.f32 %v1140, %v1167
    %v1177 = vsub.f32 %v1141, %v1168
    %v1178 = vsub.f32 %v1142, %v1169
    %v1179 = vsub.f32 %v1143, %v1170
    %v1180 = vsub.f32 %v1144, %v1171
    %vm1181 = vcmp.ge.f32.partialorder %v1172, 2.0
    %vm1182 = vcmp.ge.f32.partialorder %v1173, 2.0
    %vm1183 = vcmp.ge.f32.partialorder %v1174, 2.0
    %vm1184 = vcmp.ge.f32.partialorder %v1175, 2.0
    %vm1185 = vcmp.ge.f32.partialorder %v1176, 2.0
    %vm1186 = vcmp.ge.f32.partialorder %v1177, 2.0
    %vm1187 = vcmp.ge.f32.partialorder %v1178, 2.0
    %vm1188 = vcmp.ge.f32.partialorder %v1179, 2.0
    %vm1189 = vcmp.ge.f32.partialorder %v1180, 2.0
    %v1190 = vadd.f32 %v1154, 1.0
    %v1191 = vadd.f32 %v1155, 1.0
    %v1192 = vadd.f32 %v1156, 1.0
    %v1193 = vadd.f32 %v1157, 1.0
    %v1194 = vadd.f32 %v1158, 1.0
    %v1195 = vadd.f32 %v1159, 1.0
    %v1196 = vadd.f32 %v1160, 1.0
    %v1197 = vadd.f32 %v1161, 1.0
    %v1198 = vadd.f32 %v1162, 1.0
    %v1199 = vsel %vm1181, %v1190, %v1154
    %v1200 = vsel %vm1182, %v1191, %v1155
    %v1201 = vsel %vm1183, %v1192, %v1156
    %v1202 = vsel %vm1184, %v1193, %v1157
    %v1203 = vsel %vm1185, %v1194, %v1158
    %v1204 = vsel %vm1186, %v1195, %v1159
    %v1205 = vsel %vm1187, %v1196, %v1160
    %v1206 = vsel %vm1188, %v1197, %v1161
    %v1207 = vsel %vm1189, %v1198, %v1162
    %vm1208 = vcmp.lt.f32.partialorder %v1172, 0.0
    %vm1209 = vcmp.lt.f32.partialorder %v1173, 0.0
    %vm1210 = vcmp.lt.f32.partialorder %v1174, 0.0
    %vm1211 = vcmp.lt.f32.partialorder %v1175, 0.0
    %vm1212 = vcmp.lt.f32.partialorder %v1176, 0.0
    %vm1213 = vcmp.lt.f32.partialorder %v1177, 0.0
    %vm1214 = vcmp.lt.f32.partialorder %v1178, 0.0
    %vm1215 = vcmp.lt.f32.partialorder %v1179, 0.0
    %vm1216 = vcmp.lt.f32.partialorder %v1180, 0.0
    %v1217 = vsub.f32 %v1199, 1.0
    %v1218 = vsub.f32 %v1200, 1.0
    %v1219 = vsub.f32 %v1201, 1.0
    %v1220 = vsub.f32 %v1202, 1.0
    %v1221 = vsub.f32 %v1203, 1.0
    %v1222 = vsub.f32 %v1204, 1.0
    %v1223 = vsub.f32 %v1205, 1.0
    %v1224 = vsub.f32 %v1206, 1.0
    %v1225 = vsub.f32 %v1207, 1.0
    %v1226 = vsel %vm1208, %v1217, %v1199
    %v1227 = vsel %vm1209, %v1218, %v1200
    %v1228 = vsel %vm1210, %v1219, %v1201
    %v1229 = vsel %vm1211, %v1220, %v1202
    %v1230 = vsel %vm1212, %v1221, %v1203
    %v1231 = vsel %vm1213, %v1222, %v1204
    %v1232 = vsel %vm1214, %v1223, %v1205
    %v1233 = vsel %vm1215, %v1224, %v1206
    %v1234 = vsel %vm1216, %v1225, %v1207
    %v1235 = vmul.f32 %v1226, 2.0
    %v1236 = vmul.f32 %v1227, 2.0
    %v1237 = vmul.f32 %v1228, 2.0
    %v1238 = vmul.f32 %v1229, 2.0
    %v1239 = vmul.f32 %v1230, 2.0
    %v1240 = vmul.f32 %v1231, 2.0
    %v1241 = vmul.f32 %v1232, 2.0
    %v1242 = vmul.f32 %v1233, 2.0
    %v1243 = vmul.f32 %v1234, 2.0
    %v1244 = vsub.f32 %v1136, %v1235
    %v1245 = vsub.f32 %v1137, %v1236
    %v1246 = vsub.f32 %v1138, %v1237
    %v1247 = vsub.f32 %v1139, %v1238
    %v1248 = vsub.f32 %v1140, %v1239
    %v1249 = vsub.f32 %v1141, %v1240
    %v1250 = vsub.f32 %v1142, %v1241
    %v1251 = vsub.f32 %v1143, %v1242
    %v1252 = vsub.f32 %v1144, %v1243
    %s1253 = scalar_lea.vmem [#allocation2], 76
    %v1254 = vld [vmem:[%s1253] ss:$8 sm:$0xf]
    %v1255 = vld [vmem:[%s1253] ss:$8 sm:$0xf0]
    %v1256 = vor.u32 %v1254, %v1255
    %s1257 = scalar_lea.vmem [#allocation2], 140
    %v1258 = vld [vmem:[%s1257] ss:$8 sm:$0x1]
    %v1261 = vlaneseq
    %v1262 = vshrl.u32 %v1261, 7
    %v1263 = vsub.s32 0, %v1262
    %v1264 = vrot.slane %v1256, %v1263
    %v1265 = vlaneseq
    %v1266 = vshrl.u32 %v1265, 7
    %v1267 = vsub.s32 1, %v1266
    %v1268 = vrot.slane %v1256, %v1267
    %v1269 = vlaneseq
    %v1270 = vshrl.u32 %v1269, 7
    %v1271 = vsub.s32 2, %v1270
    %v1272 = vrot.slane %v1256, %v1271
    %v1273 = vlaneseq
    %v1274 = vshrl.u32 %v1273, 7
    %v1275 = vsub.s32 3, %v1274
    %v1276 = vrot.slane %v1256, %v1275
    %v1277 = vlaneseq
    %v1278 = vshrl.u32 %v1277, 7
    %v1279 = vsub.s32 4, %v1278
    %v1280 = vrot.slane %v1256, %v1279
    %v1281 = vlaneseq
    %v1282 = vshrl.u32 %v1281, 7
    %v1283 = vsub.s32 5, %v1282
    %v1284 = vrot.slane %v1256, %v1283
    %v1285 = vlaneseq
    %v1286 = vshrl.u32 %v1285, 7
    %v1287 = vsub.s32 6, %v1286
    %v1288 = vrot.slane %v1256, %v1287
    %v1289 = vlaneseq
    %v1290 = vshrl.u32 %v1289, 7
    %v1291 = vsub.s32 7, %v1290
    %v1292 = vrot.slane %v1256, %v1291
    %v1293 = vlaneseq
    %v1294 = vshrl.u32 %v1293, 7
    %v1295 = vsub.s32 0, %v1294
    %v1296 = vrot.slane %v1258, %v1295
    %v1306 = vmul.f32 %v1226, %v1264
    %v1307 = vmul.f32 %v1227, %v1268
    %v1308 = vmul.f32 %v1228, %v1272
    %v1309 = vmul.f32 %v1229, %v1276
    %v1310 = vmul.f32 %v1230, %v1280
    %v1311 = vmul.f32 %v1231, %v1284
    %v1312 = vmul.f32 %v1232, %v1288
    %v1313 = vmul.f32 %v1233, %v1292
    %v1314 = vmul.f32 %v1234, %v1296
    %s1315 = scalar_lea.vmem [#allocation2], 77
    %v1316 = vld [vmem:[%s1315] ss:$8 sm:$0xf]
    %v1317 = vld [vmem:[%s1315] ss:$8 sm:$0xf0]
    %v1318 = vor.u32 %v1316, %v1317
    %s1319 = scalar_lea.vmem [#allocation2], 141
    %v1320 = vld [vmem:[%s1319] ss:$8 sm:$0x1]
    %v1323 = vlaneseq
    %v1324 = vshrl.u32 %v1323, 7
    %v1325 = vsub.s32 0, %v1324
    %v1326 = vrot.slane %v1318, %v1325
    %v1327 = vlaneseq
    %v1328 = vshrl.u32 %v1327, 7
    %v1329 = vsub.s32 1, %v1328
    %v1330 = vrot.slane %v1318, %v1329
    %v1331 = vlaneseq
    %v1332 = vshrl.u32 %v1331, 7
    %v1333 = vsub.s32 2, %v1332
    %v1334 = vrot.slane %v1318, %v1333
    %v1335 = vlaneseq
    %v1336 = vshrl.u32 %v1335, 7
    %v1337 = vsub.s32 3, %v1336
    %v1338 = vrot.slane %v1318, %v1337
    %v1339 = vlaneseq
    %v1340 = vshrl.u32 %v1339, 7
    %v1341 = vsub.s32 4, %v1340
    %v1342 = vrot.slane %v1318, %v1341
    %v1343 = vlaneseq
    %v1344 = vshrl.u32 %v1343, 7
    %v1345 = vsub.s32 5, %v1344
    %v1346 = vrot.slane %v1318, %v1345
    %v1347 = vlaneseq
    %v1348 = vshrl.u32 %v1347, 7
    %v1349 = vsub.s32 6, %v1348
    %v1350 = vrot.slane %v1318, %v1349
    %v1351 = vlaneseq
    %v1352 = vshrl.u32 %v1351, 7
    %v1353 = vsub.s32 7, %v1352
    %v1354 = vrot.slane %v1318, %v1353
    %v1355 = vlaneseq
    %v1356 = vshrl.u32 %v1355, 7
    %v1357 = vsub.s32 0, %v1356
    %v1358 = vrot.slane %v1320, %v1357
    %v1368 = vmul.f32 %v1244, %v1326
    %v1369 = vmul.f32 %v1245, %v1330
    %v1370 = vmul.f32 %v1246, %v1334
    %v1371 = vmul.f32 %v1247, %v1338
    %v1372 = vmul.f32 %v1248, %v1342
    %v1373 = vmul.f32 %v1249, %v1346
    %v1374 = vmul.f32 %v1250, %v1350
    %v1375 = vmul.f32 %v1251, %v1354
    %v1376 = vmul.f32 %v1252, %v1358
    %v1377 = vadd.f32 %v1306, %v1368
    %v1378 = vadd.f32 %v1307, %v1369
    %v1379 = vadd.f32 %v1308, %v1370
    %v1380 = vadd.f32 %v1309, %v1371
    %v1381 = vadd.f32 %v1310, %v1372
    %v1382 = vadd.f32 %v1311, %v1373
    %v1383 = vadd.f32 %v1312, %v1374
    %v1384 = vadd.f32 %v1313, %v1375
    %v1385 = vadd.f32 %v1314, %v1376
    %s1386 = scalar_lea.vmem [#allocation2], 78
    %v1387 = vld [vmem:[%s1386] ss:$8 sm:$0xf]
    %v1388 = vld [vmem:[%s1386] ss:$8 sm:$0xf0]
    %v1389 = vor.u32 %v1387, %v1388
    %s1390 = scalar_lea.vmem [#allocation2], 142
    %v1391 = vld [vmem:[%s1390] ss:$8 sm:$0x1]
    %v1394 = vlaneseq
    %v1395 = vshrl.u32 %v1394, 7
    %v1396 = vsub.s32 0, %v1395
    %v1397 = vrot.slane %v1389, %v1396
    %v1398 = vlaneseq
    %v1399 = vshrl.u32 %v1398, 7
    %v1400 = vsub.s32 1, %v1399
    %v1401 = vrot.slane %v1389, %v1400
    %v1402 = vlaneseq
    %v1403 = vshrl.u32 %v1402, 7
    %v1404 = vsub.s32 2, %v1403
    %v1405 = vrot.slane %v1389, %v1404
    %v1406 = vlaneseq
    %v1407 = vshrl.u32 %v1406, 7
    %v1408 = vsub.s32 3, %v1407
    %v1409 = vrot.slane %v1389, %v1408
    %v1410 = vlaneseq
    %v1411 = vshrl.u32 %v1410, 7
    %v1412 = vsub.s32 4, %v1411
    %v1413 = vrot.slane %v1389, %v1412
    %v1414 = vlaneseq
    %v1415 = vshrl.u32 %v1414, 7
    %v1416 = vsub.s32 5, %v1415
    %v1417 = vrot.slane %v1389, %v1416
    %v1418 = vlaneseq
    %v1419 = vshrl.u32 %v1418, 7
    %v1420 = vsub.s32 6, %v1419
    %v1421 = vrot.slane %v1389, %v1420
    %v1422 = vlaneseq
    %v1423 = vshrl.u32 %v1422, 7
    %v1424 = vsub.s32 7, %v1423
    %v1425 = vrot.slane %v1389, %v1424
    %v1426 = vlaneseq
    %v1427 = vshrl.u32 %v1426, 7
    %v1428 = vsub.s32 0, %v1427
    %v1429 = vrot.slane %v1391, %v1428
    %v1439 = vadd.f32 %v1377, %v1397
    %v1440 = vadd.f32 %v1378, %v1401
    %v1441 = vadd.f32 %v1379, %v1405
    %v1442 = vadd.f32 %v1380, %v1409
    %v1443 = vadd.f32 %v1381, %v1413
    %v1444 = vadd.f32 %v1382, %v1417
    %v1445 = vadd.f32 %v1383, %v1421
    %v1446 = vadd.f32 %v1384, %v1425
    %v1447 = vadd.f32 %v1385, %v1429
    %vm1448 = vcmp.ge.f32.partialorder %v1136, 0.0
    %vm1449 = vcmp.ge.f32.partialorder %v1137, 0.0
    %vm1450 = vcmp.ge.f32.partialorder %v1138, 0.0
    %vm1451 = vcmp.ge.f32.partialorder %v1139, 0.0
    %vm1452 = vcmp.ge.f32.partialorder %v1140, 0.0
    %vm1453 = vcmp.ge.f32.partialorder %v1141, 0.0
    %vm1454 = vcmp.ge.f32.partialorder %v1142, 0.0
    %vm1455 = vcmp.ge.f32.partialorder %v1143, 0.0
    %vm1456 = vcmp.ge.f32.partialorder %v1144, 0.0
    %vm1457 = vcmp.lt.f32.partialorder %v1136, 4.0
    %vm1458 = vcmp.lt.f32.partialorder %v1137, 4.0
    %vm1459 = vcmp.lt.f32.partialorder %v1138, 4.0
    %vm1460 = vcmp.lt.f32.partialorder %v1139, 4.0
    %vm1461 = vcmp.lt.f32.partialorder %v1140, 4.0
    %vm1462 = vcmp.lt.f32.partialorder %v1141, 4.0
    %vm1463 = vcmp.lt.f32.partialorder %v1142, 4.0
    %vm1464 = vcmp.lt.f32.partialorder %v1143, 4.0
    %vm1465 = vcmp.lt.f32.partialorder %v1144, 4.0
    %vm1466 = vmand %vm1448, %vm1457
    %vm1467 = vmand %vm1449, %vm1458
    %vm1468 = vmand %vm1450, %vm1459
    %vm1469 = vmand %vm1451, %vm1460
    %vm1470 = vmand %vm1452, %vm1461
    %vm1471 = vmand %vm1453, %vm1462
    %vm1472 = vmand %vm1454, %vm1463
    %vm1473 = vmand %vm1455, %vm1464
    %vm1474 = vmand %vm1456, %vm1465
    %v1475 = vsel %vm1466, %v1439, 0.0
    %v1476 = vsel %vm1467, %v1440, 0.0
    %v1477 = vsel %vm1468, %v1441, 0.0
    %v1478 = vsel %vm1469, %v1442, 0.0
    %v1479 = vsel %vm1470, %v1443, 0.0
    %v1480 = vsel %vm1471, %v1444, 0.0
    %v1481 = vsel %vm1472, %v1445, 0.0
    %v1482 = vsel %vm1473, %v1446, 0.0
    %v1483 = vsel %vm1474, %v1447, 0.0
    %v1484 = vadd.f32 %v1127, %v1475
    %v1485 = vadd.f32 %v1128, %v1476
    %v1486 = vadd.f32 %v1129, %v1477
    %v1487 = vadd.f32 %v1130, %v1478
    %v1488 = vadd.f32 %v1131, %v1479
    %v1489 = vadd.f32 %v1132, %v1480
    %v1490 = vadd.f32 %v1133, %v1481
    %v1491 = vadd.f32 %v1134, %v1482
    %v1492 = vadd.f32 %v1135, %v1483
    %v1493 = vsub.f32 %v413, 340.0
    %v1494 = vsub.f32 %v414, 340.0
    %v1495 = vsub.f32 %v415, 340.0
    %v1496 = vsub.f32 %v416, 340.0
    %v1497 = vsub.f32 %v417, 340.0
    %v1498 = vsub.f32 %v418, 340.0
    %v1499 = vsub.f32 %v419, 340.0
    %v1500 = vsub.f32 %v420, 340.0
    %v1501 = vsub.f32 %v421, 340.0
    %v1502 = vfloor.f32 %v1493
    %v1503 = vfloor.f32 %v1494
    %v1504 = vfloor.f32 %v1495
    %v1505 = vfloor.f32 %v1496
    %v1506 = vfloor.f32 %v1497
    %v1507 = vfloor.f32 %v1498
    %v1508 = vfloor.f32 %v1499
    %v1509 = vfloor.f32 %v1500
    %v1510 = vfloor.f32 %v1501
    %v1511 = vsub.f32 %v1493, %v1502
    %v1512 = vsub.f32 %v1494, %v1503
    %v1513 = vsub.f32 %v1495, %v1504
    %v1514 = vsub.f32 %v1496, %v1505
    %v1515 = vsub.f32 %v1497, %v1506
    %v1516 = vsub.f32 %v1498, %v1507
    %v1517 = vsub.f32 %v1499, %v1508
    %v1518 = vsub.f32 %v1500, %v1509
    %v1519 = vsub.f32 %v1501, %v1510
    %vm1520 = vcmp.ge.f32.partialorder %v1511, 1.0
    %vm1521 = vcmp.ge.f32.partialorder %v1512, 1.0
    %vm1522 = vcmp.ge.f32.partialorder %v1513, 1.0
    %vm1523 = vcmp.ge.f32.partialorder %v1514, 1.0
    %vm1524 = vcmp.ge.f32.partialorder %v1515, 1.0
    %vm1525 = vcmp.ge.f32.partialorder %v1516, 1.0
    %vm1526 = vcmp.ge.f32.partialorder %v1517, 1.0
    %vm1527 = vcmp.ge.f32.partialorder %v1518, 1.0
    %vm1528 = vcmp.ge.f32.partialorder %v1519, 1.0
    %v1529 = vadd.f32 %v1502, 1.0
    %v1530 = vadd.f32 %v1503, 1.0
    %v1531 = vadd.f32 %v1504, 1.0
    %v1532 = vadd.f32 %v1505, 1.0
    %v1533 = vadd.f32 %v1506, 1.0
    %v1534 = vadd.f32 %v1507, 1.0
    %v1535 = vadd.f32 %v1508, 1.0
    %v1536 = vadd.f32 %v1509, 1.0
    %v1537 = vadd.f32 %v1510, 1.0
    %v1538 = vsel %vm1520, %v1529, %v1502
    %v1539 = vsel %vm1521, %v1530, %v1503
    %v1540 = vsel %vm1522, %v1531, %v1504
    %v1541 = vsel %vm1523, %v1532, %v1505
    %v1542 = vsel %vm1524, %v1533, %v1506
    %v1543 = vsel %vm1525, %v1534, %v1507
    %v1544 = vsel %vm1526, %v1535, %v1508
    %v1545 = vsel %vm1527, %v1536, %v1509
    %v1546 = vsel %vm1528, %v1537, %v1510
    %vm1547 = vcmp.lt.f32.partialorder %v1511, 0.0
    %vm1548 = vcmp.lt.f32.partialorder %v1512, 0.0
    %vm1549 = vcmp.lt.f32.partialorder %v1513, 0.0
    %vm1550 = vcmp.lt.f32.partialorder %v1514, 0.0
    %vm1551 = vcmp.lt.f32.partialorder %v1515, 0.0
    %vm1552 = vcmp.lt.f32.partialorder %v1516, 0.0
    %vm1553 = vcmp.lt.f32.partialorder %v1517, 0.0
    %vm1554 = vcmp.lt.f32.partialorder %v1518, 0.0
    %vm1555 = vcmp.lt.f32.partialorder %v1519, 0.0
    %v1556 = vsub.f32 %v1538, 1.0
    %v1557 = vsub.f32 %v1539, 1.0
    %v1558 = vsub.f32 %v1540, 1.0
    %v1559 = vsub.f32 %v1541, 1.0
    %v1560 = vsub.f32 %v1542, 1.0
    %v1561 = vsub.f32 %v1543, 1.0
    %v1562 = vsub.f32 %v1544, 1.0
    %v1563 = vsub.f32 %v1545, 1.0
    %v1564 = vsub.f32 %v1546, 1.0
    %v1565 = vsel %vm1547, %v1556, %v1538
    %v1566 = vsel %vm1548, %v1557, %v1539
    %v1567 = vsel %vm1549, %v1558, %v1540
    %v1568 = vsel %vm1550, %v1559, %v1541
    %v1569 = vsel %vm1551, %v1560, %v1542
    %v1570 = vsel %vm1552, %v1561, %v1543
    %v1571 = vsel %vm1553, %v1562, %v1544
    %v1572 = vsel %vm1554, %v1563, %v1545
    %v1573 = vsel %vm1555, %v1564, %v1546
    %v1574 = vsub.f32 %v1493, %v1565
    %v1575 = vsub.f32 %v1494, %v1566
    %v1576 = vsub.f32 %v1495, %v1567
    %v1577 = vsub.f32 %v1496, %v1568
    %v1578 = vsub.f32 %v1497, %v1569
    %v1579 = vsub.f32 %v1498, %v1570
    %v1580 = vsub.f32 %v1499, %v1571
    %v1581 = vsub.f32 %v1500, %v1572
    %v1582 = vsub.f32 %v1501, %v1573
    %s1583 = scalar_lea.vmem [#allocation2], 144
    %v1584 = vld [vmem:[%s1583] ss:$8 sm:$0xf]
    %v1585 = vld [vmem:[%s1583] ss:$8 sm:$0xf0]
    %v1586 = vor.u32 %v1584, %v1585
    %s1587 = scalar_lea.vmem [#allocation2], 208
    %v1588 = vld [vmem:[%s1587] ss:$8 sm:$0x1]
    %v1591 = vlaneseq
    %v1592 = vshrl.u32 %v1591, 7
    %v1593 = vsub.s32 0, %v1592
    %v1594 = vrot.slane %v1586, %v1593
    %v1595 = vlaneseq
    %v1596 = vshrl.u32 %v1595, 7
    %v1597 = vsub.s32 1, %v1596
    %v1598 = vrot.slane %v1586, %v1597
    %v1599 = vlaneseq
    %v1600 = vshrl.u32 %v1599, 7
    %v1601 = vsub.s32 2, %v1600
    %v1602 = vrot.slane %v1586, %v1601
    %v1603 = vlaneseq
    %v1604 = vshrl.u32 %v1603, 7
    %v1605 = vsub.s32 3, %v1604
    %v1606 = vrot.slane %v1586, %v1605
    %v1607 = vlaneseq
    %v1608 = vshrl.u32 %v1607, 7
    %v1609 = vsub.s32 4, %v1608
    %v1610 = vrot.slane %v1586, %v1609
    %v1611 = vlaneseq
    %v1612 = vshrl.u32 %v1611, 7
    %v1613 = vsub.s32 5, %v1612
    %v1614 = vrot.slane %v1586, %v1613
    %v1615 = vlaneseq
    %v1616 = vshrl.u32 %v1615, 7
    %v1617 = vsub.s32 6, %v1616
    %v1618 = vrot.slane %v1586, %v1617
    %v1619 = vlaneseq
    %v1620 = vshrl.u32 %v1619, 7
    %v1621 = vsub.s32 7, %v1620
    %v1622 = vrot.slane %v1586, %v1621
    %v1623 = vlaneseq
    %v1624 = vshrl.u32 %v1623, 7
    %v1625 = vsub.s32 0, %v1624
    %v1626 = vrot.slane %v1588, %v1625
    %v1636 = vmul.f32 %v1565, %v1594
    %v1637 = vmul.f32 %v1566, %v1598
    %v1638 = vmul.f32 %v1567, %v1602
    %v1639 = vmul.f32 %v1568, %v1606
    %v1640 = vmul.f32 %v1569, %v1610
    %v1641 = vmul.f32 %v1570, %v1614
    %v1642 = vmul.f32 %v1571, %v1618
    %v1643 = vmul.f32 %v1572, %v1622
    %v1644 = vmul.f32 %v1573, %v1626
    %s1645 = scalar_lea.vmem [#allocation2], 145
    %v1646 = vld [vmem:[%s1645] ss:$8 sm:$0xf]
    %v1647 = vld [vmem:[%s1645] ss:$8 sm:$0xf0]
    %v1648 = vor.u32 %v1646, %v1647
    %s1649 = scalar_lea.vmem [#allocation2], 209
    %v1650 = vld [vmem:[%s1649] ss:$8 sm:$0x1]
    %v1653 = vlaneseq
    %v1654 = vshrl.u32 %v1653, 7
    %v1655 = vsub.s32 0, %v1654
    %v1656 = vrot.slane %v1648, %v1655
    %v1657 = vlaneseq
    %v1658 = vshrl.u32 %v1657, 7
    %v1659 = vsub.s32 1, %v1658
    %v1660 = vrot.slane %v1648, %v1659
    %v1661 = vlaneseq
    %v1662 = vshrl.u32 %v1661, 7
    %v1663 = vsub.s32 2, %v1662
    %v1664 = vrot.slane %v1648, %v1663
    %v1665 = vlaneseq
    %v1666 = vshrl.u32 %v1665, 7
    %v1667 = vsub.s32 3, %v1666
    %v1668 = vrot.slane %v1648, %v1667
    %v1669 = vlaneseq
    %v1670 = vshrl.u32 %v1669, 7
    %v1671 = vsub.s32 4, %v1670
    %v1672 = vrot.slane %v1648, %v1671
    %v1673 = vlaneseq
    %v1674 = vshrl.u32 %v1673, 7
    %v1675 = vsub.s32 5, %v1674
    %v1676 = vrot.slane %v1648, %v1675
    %v1677 = vlaneseq
    %v1678 = vshrl.u32 %v1677, 7
    %v1679 = vsub.s32 6, %v1678
    %v1680 = vrot.slane %v1648, %v1679
    %v1681 = vlaneseq
    %v1682 = vshrl.u32 %v1681, 7
    %v1683 = vsub.s32 7, %v1682
    %v1684 = vrot.slane %v1648, %v1683
    %v1685 = vlaneseq
    %v1686 = vshrl.u32 %v1685, 7
    %v1687 = vsub.s32 0, %v1686
    %v1688 = vrot.slane %v1650, %v1687
    %v1698 = vmul.f32 %v1574, %v1656
    %v1699 = vmul.f32 %v1575, %v1660
    %v1700 = vmul.f32 %v1576, %v1664
    %v1701 = vmul.f32 %v1577, %v1668
    %v1702 = vmul.f32 %v1578, %v1672
    %v1703 = vmul.f32 %v1579, %v1676
    %v1704 = vmul.f32 %v1580, %v1680
    %v1705 = vmul.f32 %v1581, %v1684
    %v1706 = vmul.f32 %v1582, %v1688
    %v1707 = vadd.f32 %v1636, %v1698
    %v1708 = vadd.f32 %v1637, %v1699
    %v1709 = vadd.f32 %v1638, %v1700
    %v1710 = vadd.f32 %v1639, %v1701
    %v1711 = vadd.f32 %v1640, %v1702
    %v1712 = vadd.f32 %v1641, %v1703
    %v1713 = vadd.f32 %v1642, %v1704
    %v1714 = vadd.f32 %v1643, %v1705
    %v1715 = vadd.f32 %v1644, %v1706
    %s1716 = scalar_lea.vmem [#allocation2], 146
    %v1717 = vld [vmem:[%s1716] ss:$8 sm:$0xf]
    %v1718 = vld [vmem:[%s1716] ss:$8 sm:$0xf0]
    %v1719 = vor.u32 %v1717, %v1718
    %s1720 = scalar_lea.vmem [#allocation2], 210
    %v1721 = vld [vmem:[%s1720] ss:$8 sm:$0x1]
    %v1724 = vlaneseq
    %v1725 = vshrl.u32 %v1724, 7
    %v1726 = vsub.s32 0, %v1725
    %v1727 = vrot.slane %v1719, %v1726
    %v1728 = vlaneseq
    %v1729 = vshrl.u32 %v1728, 7
    %v1730 = vsub.s32 1, %v1729
    %v1731 = vrot.slane %v1719, %v1730
    %v1732 = vlaneseq
    %v1733 = vshrl.u32 %v1732, 7
    %v1734 = vsub.s32 2, %v1733
    %v1735 = vrot.slane %v1719, %v1734
    %v1736 = vlaneseq
    %v1737 = vshrl.u32 %v1736, 7
    %v1738 = vsub.s32 3, %v1737
    %v1739 = vrot.slane %v1719, %v1738
    %v1740 = vlaneseq
    %v1741 = vshrl.u32 %v1740, 7
    %v1742 = vsub.s32 4, %v1741
    %v1743 = vrot.slane %v1719, %v1742
    %v1744 = vlaneseq
    %v1745 = vshrl.u32 %v1744, 7
    %v1746 = vsub.s32 5, %v1745
    %v1747 = vrot.slane %v1719, %v1746
    %v1748 = vlaneseq
    %v1749 = vshrl.u32 %v1748, 7
    %v1750 = vsub.s32 6, %v1749
    %v1751 = vrot.slane %v1719, %v1750
    %v1752 = vlaneseq
    %v1753 = vshrl.u32 %v1752, 7
    %v1754 = vsub.s32 7, %v1753
    %v1755 = vrot.slane %v1719, %v1754
    %v1756 = vlaneseq
    %v1757 = vshrl.u32 %v1756, 7
    %v1758 = vsub.s32 0, %v1757
    %v1759 = vrot.slane %v1721, %v1758
    %v1769 = vadd.f32 %v1707, %v1727
    %v1770 = vadd.f32 %v1708, %v1731
    %v1771 = vadd.f32 %v1709, %v1735
    %v1772 = vadd.f32 %v1710, %v1739
    %v1773 = vadd.f32 %v1711, %v1743
    %v1774 = vadd.f32 %v1712, %v1747
    %v1775 = vadd.f32 %v1713, %v1751
    %v1776 = vadd.f32 %v1714, %v1755
    %v1777 = vadd.f32 %v1715, %v1759
    %vm1778 = vcmp.ge.f32.partialorder %v1493, 0.0
    %vm1779 = vcmp.ge.f32.partialorder %v1494, 0.0
    %vm1780 = vcmp.ge.f32.partialorder %v1495, 0.0
    %vm1781 = vcmp.ge.f32.partialorder %v1496, 0.0
    %vm1782 = vcmp.ge.f32.partialorder %v1497, 0.0
    %vm1783 = vcmp.ge.f32.partialorder %v1498, 0.0
    %vm1784 = vcmp.ge.f32.partialorder %v1499, 0.0
    %vm1785 = vcmp.ge.f32.partialorder %v1500, 0.0
    %vm1786 = vcmp.ge.f32.partialorder %v1501, 0.0
    %vm1787 = vcmp.lt.f32.partialorder %v1493, 1.0
    %vm1788 = vcmp.lt.f32.partialorder %v1494, 1.0
    %vm1789 = vcmp.lt.f32.partialorder %v1495, 1.0
    %vm1790 = vcmp.lt.f32.partialorder %v1496, 1.0
    %vm1791 = vcmp.lt.f32.partialorder %v1497, 1.0
    %vm1792 = vcmp.lt.f32.partialorder %v1498, 1.0
    %vm1793 = vcmp.lt.f32.partialorder %v1499, 1.0
    %vm1794 = vcmp.lt.f32.partialorder %v1500, 1.0
    %vm1795 = vcmp.lt.f32.partialorder %v1501, 1.0
    %vm1796 = vmand %vm1778, %vm1787
    %vm1797 = vmand %vm1779, %vm1788
    %vm1798 = vmand %vm1780, %vm1789
    %vm1799 = vmand %vm1781, %vm1790
    %vm1800 = vmand %vm1782, %vm1791
    %vm1801 = vmand %vm1783, %vm1792
    %vm1802 = vmand %vm1784, %vm1793
    %vm1803 = vmand %vm1785, %vm1794
    %vm1804 = vmand %vm1786, %vm1795
    %v1805 = vsel %vm1796, %v1769, 0.0
    %v1806 = vsel %vm1797, %v1770, 0.0
    %v1807 = vsel %vm1798, %v1771, 0.0
    %v1808 = vsel %vm1799, %v1772, 0.0
    %v1809 = vsel %vm1800, %v1773, 0.0
    %v1810 = vsel %vm1801, %v1774, 0.0
    %v1811 = vsel %vm1802, %v1775, 0.0
    %v1812 = vsel %vm1803, %v1776, 0.0
    %v1813 = vsel %vm1804, %v1777, 0.0
    %v1814 = vadd.f32 %v1484, %v1805
    %v1815 = vadd.f32 %v1485, %v1806
    %v1816 = vadd.f32 %v1486, %v1807
    %v1817 = vadd.f32 %v1487, %v1808
    %v1818 = vadd.f32 %v1488, %v1809
    %v1819 = vadd.f32 %v1489, %v1810
    %v1820 = vadd.f32 %v1490, %v1811
    %v1821 = vadd.f32 %v1491, %v1812
    %v1822 = vadd.f32 %v1492, %v1813
    %1823 = vst [vmem:[#allocation7 + $0x48] sm:$0xff] %v1814
    %1824 = vst [vmem:[#allocation7 + $0x50] sm:$0xff] %v1815
    %1825 = vst [vmem:[#allocation7 + $0x58] sm:$0xff] %v1816
    %1826 = vst [vmem:[#allocation7 + $0x60] sm:$0xff] %v1817
    %1827 = vst [vmem:[#allocation7 + $0x68] sm:$0xff] %v1818
    %1828 = vst [vmem:[#allocation7 + $0x70] sm:$0xff] %v1819
    %1829 = vst [vmem:[#allocation7 + $0x78] sm:$0xff] %v1820
    %1830 = vst [vmem:[#allocation7 + $0x80] sm:$0xff] %v1821
    %1831 = vst [vmem:[#allocation7 + $0x88] sm:$0xff] %v1822
    // Predicated region
    $region18: #{tpu_custom_call.1} parent=1 // pred_check
      _
    $region19: #{tpu_custom_call.1} parent=1 // pred_check_branch
      %1833 = sbr.rel (0) target = $region21
    $region20: #{tpu_custom_call.1} parent=1 // pred_region
      %s1835 = ssub.s32 2304, 2304
      %1836 = vsyncadd [#allocation4], %s1835
      %s1837 = sshll.u32 [#allocation7], 4
      %s1838 = int_to_ptr.vmem [resolvable:$true] %s1837
      %1843 = dma.vmem_to_hbm [thread:$0]  %s1838, 2304, %s2, [#allocation4], 1152, 1152, 72
    $region21: #{tpu_custom_call.1} parent=1 // pred_fallthru
      _
    // Predicated region
    $region22: #{tpu_custom_call.1} parent=1 // pred_check
      _
    $region23: #{tpu_custom_call.1} parent=1 // pred_check_branch
      %1845 = sbr.rel (0) target = $region25
    $region24: #{tpu_custom_call.1} parent=1 // pred_region
      %1846 = dma.done [#allocation4], 2304
    $region25: #{tpu_custom_call.1} parent=1 // pred_fallthru
      _
    %1847 = vsyncpa [#allocation3], 1
    %1848 = vsyncpa [#allocation6], 1
    %1849 = vsyncpa [#allocation4], 1

</llo_original>
